<compile_context>
chip_gen: v6e
topology: v6e:2x2x1
jax: 0.10.0
libtpu: 0.0.40
codegen_flags: <defaults>
</compile_context>

<pallas_src>
import functools

import jax
import jax.numpy as jnp
from jax.experimental import pallas as pl
from jax.experimental.pallas import tpu as pltpu


# ----------------------------------------------------------------------------
# Pallas kernel (nB batch images per grid step, pixels lane-dense)
# ----------------------------------------------------------------------------
def _realnvp_kernel(H, W, C, K, nB,
                    x_ref,       # (CP, nB*HW)   channel-padded input
                    mask_ref,    # (1,  nB*HW)   checkerboard mask b (tiled per image)
                    tap_ref,     # (K*K, nB*HW)  per-tap 'same'-padding validity masks
                    w1_ref,      # (2*hid, K*K*CP)  fused s/t layer-1 im2col weights
                    b1_ref,      # (2*hid, 1)       fused s/t layer-1 bias
                    w2_ref,      # (K*K*2*C, 2*hid) stacked per-tap block-diag s/t layer-2 weights
                    hsum_ref,    # (HW, W)          one-hot column-sum matrix for log-det
                    inv_ref,     # out: (C, nB*HW)
                    logdet_ref): # out: (nB, W)
    HW = H * W
    N = nB * HW
    P = K // 2
    C2 = 2 * C

    m = mask_ref[...]                          # (1, N)
    xp = x_ref[...]                            # (CP, N)
    xb = xp * m                                # masked input b*x (lane-dense)

    tap = tap_ref[...]                         # (K*K, N), per-image validity
    taps = [(dy, dx) for dy in range(K) for dx in range(K)]

    def shift_and_mask(a, ti):
        # returns a[:, p + delta] with out-of-image taps zeroed (so the circular
        # roll never leaks data across image boundaries or image edges).
        dy, dx = taps[ti]
        delta = (dy - P) * W + (dx - P)
        r = a if delta == 0 else pltpu.roll(a, (-delta) % N, axis=1)
        return r * tap[ti:ti + 1, :]

    # ---- layer 1 (s & t fused): conv(C -> 2*hid) + bias, leaky_relu ---------
    p1 = jnp.concatenate([shift_and_mask(xb, ti) for ti in range(K * K)],
                         axis=0)                                    # (K*K*CP, N)
    h = jnp.dot(w1_ref[...], p1, preferred_element_type=jnp.float32)
    h = h + b1_ref[...]                                             # (2*hid, N)
    h = jnp.where(h >= 0, h, 0.01 * h)                              # leaky_relu

    # ---- layer 2: conv(hid -> C), no bias (restructured) --------------------
    # One stacked matmul -> all per-tap outputs; then roll/mask the small
    # (2C, N) tap outputs and accumulate.  Rows [0:C] = s-branch, [C:2C] = t.
    y = jnp.dot(w2_ref[...], h, preferred_element_type=jnp.float32)  # (K*K*2C, N)
    acc = jnp.zeros((C2, N), jnp.float32)
    for ti in range(K * K):
        acc = acc + shift_and_mask(y[ti * C2:(ti + 1) * C2, :], ti)
    s_out = jnp.tanh(acc[:C])                                        # (C, N)
    t_out = acc[C:]                                                  # (C, N)

    # ---- inverse blend (lane-dense) ------------------------------------------
    one_minus_m = 1.0 - m
    x = xp[:C]
    inv_ref[...] = xb[:C] + one_minus_m * (x * jnp.exp(s_out) + t_out)

    # ---- log-det: sum_{c,y} (s*(1-b)) per image, per column x ----------------
    v = jnp.sum(s_out * one_minus_m, axis=0, keepdims=True)          # (1, N)
    hs = hsum_ref[...]                                               # (HW, W)
    rows = [jnp.dot(v[:, i * HW:(i + 1) * HW], hs,
                    preferred_element_type=jnp.float32)              # (1, W)
            for i in range(nB)]
    logdet_ref[...] = jnp.concatenate(rows, axis=0)                  # (nB, W)


# ----------------------------------------------------------------------------
# Wrapper (layout plumbing: NCHW <-> (channels, pixels), weight reshapes)
# ----------------------------------------------------------------------------
def realnvp_forward(x_nchw, mask_hw, params, kernel_size, images_per_step=None):
    B, C, H, W = x_nchw.shape
    K = kernel_size
    hid = params["bs1"].shape[-1]
    HW = H * W
    CP = ((C + 7) // 8) * 8
    P = K // 2

    assert hid % 8 == 0, "hidden size must be a multiple of 8"
    assert HW % 128 == 0, "H*W must be a multiple of 128 (lane tiling)"

    # How many images share one grid step (lane width = nB*HW per step).
    # On v5e/v6e (1 TensorCore, 128 MiB VMEM) prefer images_per_step = B;
    # on v7x (2 TensorCores, 64 MiB VMEM) prefer images_per_step = B // 2 so
    # both cores get a "parallel" grid step.
    if images_per_step is None:
        cap = 16
        nB = max(d for d in range(1, min(B, cap) + 1) if B % d == 0)
    else:
        nB = images_per_step
    assert B % nB == 0
    num_steps = B // nB
    N = nB * HW

    # lane-dense layouts: channels on sublanes, flattened (b, y, x) on lanes
    x_cp = jnp.transpose(x_nchw.astype(jnp.float32), (1, 0, 2, 3)).reshape(C, B * HW)
    x_cp = jnp.pad(x_cp, ((0, CP - C), (0, 0)))
    mask_n = jnp.tile(mask_hw.astype(jnp.float32).reshape(1, HW), (1, nB))  # (1, N)

    # Per-tap 'same'-padding validity masks (constant, resident in VMEM).
    ys = jnp.arange(H)[:, None]
    xs = jnp.arange(W)[None, :]
    tap_list = []
    for dy in range(K):
        for dx in range(K):
            oy, ox = dy - P, dx - P
            ok = ((ys + oy >= 0) & (ys + oy < H) & (xs + ox >= 0) & (xs + ox < W))
            tap_list.append(ok.reshape(1, HW))
    tap_masks = jnp.tile(jnp.concatenate(tap_list, axis=0).astype(jnp.float32),
                         (1, nB))                                     # (K*K, N)

    # One-hot column-sum matrix for the log-det reduction (constant).
    hsum = (jnp.arange(HW)[:, None] % W == jnp.arange(W)[None, :]
            ).astype(jnp.float32)                                     # (HW, W)

    def conv_w_to_mat(w, cin_pad):
        # (K, K, Cin, Cout) -> (Cout, K*K*cin_pad); column = (dy*K+dx)*cin_pad + i
        kh, kw, cin, cout = w.shape
        wp = jnp.pad(w.astype(jnp.float32),
                     ((0, 0), (0, 0), (0, cin_pad - cin), (0, 0)))
        return jnp.transpose(wp, (3, 0, 1, 2)).reshape(cout, kh * kw * cin_pad)

    # Fused layer-1 weights / bias (s stacked over t).
    w1 = jnp.concatenate([conv_w_to_mat(params["ws1"], CP),
                          conv_w_to_mat(params["wt1"], CP)], axis=0)  # (2*hid, K*K*CP)
    b1 = jnp.concatenate([params["bs1"].reshape(hid, 1),
                          params["bt1"].reshape(hid, 1)], axis=0)     # (2*hid, 1)

    # Stacked per-tap block-diagonal layer-2 weights: for tap (dy,dx) the block
    # is [[ws2_tap, 0], [0, wt2_tap]] (2C, 2*hid); stacked over taps -> one matmul.
    ws2 = params["ws2"].astype(jnp.float32)   # (K, K, hid, C)
    wt2 = params["wt2"].astype(jnp.float32)
    zc = jnp.zeros((C, hid), jnp.float32)
    blocks = []
    for dy in range(K):
        for dx in range(K):
            ws_t = ws2[dy, dx].T              # (C, hid)
            wt_t = wt2[dy, dx].T              # (C, hid)
            blocks.append(jnp.concatenate(
                [jnp.concatenate([ws_t, zc], axis=1),
                 jnp.concatenate([zc, wt_t], axis=1)], axis=0))       # (2C, 2*hid)
    w2 = jnp.concatenate(blocks, axis=0)                              # (K*K*2C, 2*hid)

    kern = functools.partial(_realnvp_kernel, H, W, C, K, nB)

    inv_cn, logdet = pl.pallas_call(
        kern,
        out_shape=(jax.ShapeDtypeStruct((C, B * HW), jnp.float32),
                   jax.ShapeDtypeStruct((B, W), jnp.float32)),
        grid=(num_steps,),
        in_specs=[
            pl.BlockSpec((CP, N), lambda g: (0, g)),        # x, nB images/step
            pl.BlockSpec((1, N), lambda g: (0, 0)),         # checkerboard mask
            pl.BlockSpec((K * K, N), lambda g: (0, 0)),     # tap validity masks
            pl.BlockSpec(w1.shape, lambda g: (0, 0)),       # weights (resident)
            pl.BlockSpec(b1.shape, lambda g: (0, 0)),
            pl.BlockSpec(w2.shape, lambda g: (0, 0)),
            pl.BlockSpec(hsum.shape, lambda g: (0, 0)),
        ],
        out_specs=(
            pl.BlockSpec((C, N), lambda g: (0, g)),         # inverse
            pl.BlockSpec((nB, W), lambda g: (g, 0)),        # logdet rows
        ),
        compiler_params=pltpu.CompilerParams(
            dimension_semantics=("parallel",),
            vmem_limit_bytes=32 * 1024 * 1024),
    )(x_cp, mask_n, tap_masks, w1, b1, w2, hsum)

    inverse = jnp.transpose(inv_cn.reshape(C, B, H, W), (1, 0, 2, 3))
    return inverse, logdet


# ----------------------------------------------------------------------------
# Deterministic parameter init (shapes from the module's __init__)
# ----------------------------------------------------------------------------
def init_params(key, C, hid, K):
    ks = jax.random.split(key, 6)

    def conv_w(k, cin, cout):
        scale = 1.0 / jnp.sqrt(cin * K * K)
        return scale * jax.random.normal(k, (K, K, cin, cout), jnp.float32)

    return {
        "ws1": conv_w(ks[0], C, hid),
        "bs1": 0.1 * jax.random.normal(ks[1], (1, hid), jnp.float32),
        "ws2": conv_w(ks[2], hid, C),      # use_final_bias=False
        "wt1": conv_w(ks[3], C, hid),
        "bt1": 0.1 * jax.random.normal(ks[4], (1, hid), jnp.float32),
        "wt2": conv_w(ks[5], hid, C),      # use_final_bias=False
    }


# ----------------------------------------------------------------------------
# Pure-JAX reference (for correctness check only)
# ----------------------------------------------------------------------------
def reference_forward(x_nchw, mask_hw, params, K):
    B, C, H, W = x_nchw.shape
    b = jnp.broadcast_to(mask_hw[None, None], (B, C, H, W)).astype(jnp.float32)

    def net(xin, w1, b1, w2, tanh_final):
        w1o = jnp.transpose(w1, (3, 2, 0, 1))  # (K,K,I,O) -> OIHW
        w2o = jnp.transpose(w2, (3, 2, 0, 1))
        h = jax.lax.conv_general_dilated(
            xin, w1o, (1, 1), "SAME",
            dimension_numbers=("NCHW", "OIHW", "NCHW")) + b1.reshape(1, -1, 1, 1)
        h = jnp.where(h >= 0, h, 0.01 * h)
        out = jax.lax.conv_general_dilated(
            h, w2o, (1, 1), "SAME",
            dimension_numbers=("NCHW", "OIHW", "NCHW"))
        return jnp.tanh(out) if tanh_final else out

    xb = b * x_nchw
    s = net(xb, params["ws1"], params["bs1"], params["ws2"], True)
    t = net(xb, params["wt1"], params["bt1"], params["wt2"], False)
    inverse = b * x_nchw + (1.0 - b) * (x_nchw * jnp.exp(s) + t)
    return inverse, (s * (1.0 - b)).sum((1, 2))


if __name__ == "__main__":
    B, C, H, W = 2, 4, 16, 16
    hid, K = 32, 3

    key = jax.random.PRNGKey(0)
    kx, kp = jax.random.split(key)
    x = jax.random.normal(kx, (B, C, H, W), jnp.float32)
    params = init_params(kp, C, hid, K)

    # Checkerboard mask over spatial dims, broadcast across channels (the
    # registered buffer `mask` used as `b * x`).
    mask = ((jnp.arange(H)[:, None] + jnp.arange(W)[None, :]) % 2
            ).astype(jnp.float32)

    inverse, logdet = realnvp_forward(x, mask, params, K)
    jax.block_until_ready((inverse, logdet))

    inv_ref, ld_ref = reference_forward(x, mask, params, K)
    assert inverse.shape == (B, C, H, W) and logdet.shape == (B, W)
    assert jnp.allclose(inverse, inv_ref, atol=1e-4, rtol=1e-4)
    assert jnp.allclose(logdet, ld_ref, atol=1e-4, rtol=1e-4)

    # TODO(synk): condition_on_latents / context path is unused by forward()
    # in the reference module and is not implemented here.
    print("KERNEL_OK")
</pallas_src>

<mosaic_0001>
module attributes {stable_mosaic.version = 11 : i64} {
  func.func @_realnvp_kernel(%arg0: i32, %arg1: memref<8x512xf32, #tpu.memory_space<vmem>>, %arg2: memref<1x512xf32, #tpu.memory_space<vmem>>, %arg3: memref<9x512xf32, #tpu.memory_space<vmem>>, %arg4: memref<64x72xf32, #tpu.memory_space<vmem>>, %arg5: memref<64x1xf32, #tpu.memory_space<vmem>>, %arg6: memref<72x64xf32, #tpu.memory_space<vmem>>, %arg7: memref<256x16xf32, #tpu.memory_space<vmem>>, %arg8: memref<4x512xf32, #tpu.memory_space<vmem>>, %arg9: memref<2x16xf32, #tpu.memory_space<vmem>>) attributes {dimension_semantics = [#tpu.dimension_semantics<parallel>], iteration_bounds = array<i64: 1>, scalar_prefetch = 0 : i64, scratch_operands = 0 : i64, tpu.core_type = #tpu.core_type<tc>, window_params = [{transform_indices = @transform_0, window_bounds = array<i64: 8, 512>}, {pipeline_mode = #tpu.pipeline_mode<synchronous>, transform_indices = @transform_1, window_bounds = array<i64: 1, 512>}, {pipeline_mode = #tpu.pipeline_mode<synchronous>, transform_indices = @transform_2, window_bounds = array<i64: 9, 512>}, {pipeline_mode = #tpu.pipeline_mode<synchronous>, transform_indices = @transform_3, window_bounds = array<i64: 64, 72>}, {pipeline_mode = #tpu.pipeline_mode<synchronous>, transform_indices = @transform_4, window_bounds = array<i64: 64, 1>}, {pipeline_mode = #tpu.pipeline_mode<synchronous>, transform_indices = @transform_5, window_bounds = array<i64: 72, 64>}, {pipeline_mode = #tpu.pipeline_mode<synchronous>, transform_indices = @transform_6, window_bounds = array<i64: 256, 16>}, {transform_indices = @transform_7, window_bounds = array<i64: 4, 512>}, {transform_indices = @transform_8, window_bounds = array<i64: 2, 16>}]} {
    %c0 = arith.constant 0 : index
    %c0_0 = arith.constant 0 : index
    %0 = vector.load %arg2[%c0, %c0_0] : memref<1x512xf32, #tpu.memory_space<vmem>>, vector<1x512xf32>
    %c0_1 = arith.constant 0 : index
    %c0_2 = arith.constant 0 : index
    %1 = vector.load %arg1[%c0_1, %c0_2] : memref<8x512xf32, #tpu.memory_space<vmem>>, vector<8x512xf32>
    %2 = vector.broadcast %0 : vector<1x512xf32> to vector<8x512xf32>
    %3 = arith.mulf %1, %2 : vector<8x512xf32>
    %c0_3 = arith.constant 0 : index
    %c0_4 = arith.constant 0 : index
    %4 = vector.load %arg3[%c0_3, %c0_4] : memref<9x512xf32, #tpu.memory_space<vmem>>, vector<9x512xf32>
    %c17_i32 = arith.constant 17 : i32
    %5 = tpu.dynamic_rotate %3 by %c17_i32 dim 1 : vector<8x512xf32>, i32 -> vector<8x512xf32>
    %6 = vector.extract_strided_slice %4 {offsets = [0, 0], sizes = [1, 512], strides = [1, 1]} : vector<9x512xf32> to vector<1x512xf32>
    %7 = vector.broadcast %6 : vector<1x512xf32> to vector<8x512xf32>
    %8 = arith.mulf %5, %7 : vector<8x512xf32>
    %c16_i32 = arith.constant 16 : i32
    %9 = tpu.dynamic_rotate %3 by %c16_i32 dim 1 : vector<8x512xf32>, i32 -> vector<8x512xf32>
    %10 = vector.extract_strided_slice %4 {offsets = [1, 0], sizes = [1, 512], strides = [1, 1]} : vector<9x512xf32> to vector<1x512xf32>
    %11 = vector.broadcast %10 : vector<1x512xf32> to vector<8x512xf32>
    %12 = arith.mulf %9, %11 : vector<8x512xf32>
    %c15_i32 = arith.constant 15 : i32
    %13 = tpu.dynamic_rotate %3 by %c15_i32 dim 1 : vector<8x512xf32>, i32 -> vector<8x512xf32>
    %14 = vector.extract_strided_slice %4 {offsets = [2, 0], sizes = [1, 512], strides = [1, 1]} : vector<9x512xf32> to vector<1x512xf32>
    %15 = vector.broadcast %14 : vector<1x512xf32> to vector<8x512xf32>
    %16 = arith.mulf %13, %15 : vector<8x512xf32>
    %c1_i32 = arith.constant 1 : i32
    %17 = tpu.dynamic_rotate %3 by %c1_i32 dim 1 : vector<8x512xf32>, i32 -> vector<8x512xf32>
    %18 = vector.extract_strided_slice %4 {offsets = [3, 0], sizes = [1, 512], strides = [1, 1]} : vector<9x512xf32> to vector<1x512xf32>
    %19 = vector.broadcast %18 : vector<1x512xf32> to vector<8x512xf32>
    %20 = arith.mulf %17, %19 : vector<8x512xf32>
    %21 = vector.extract_strided_slice %4 {offsets = [4, 0], sizes = [1, 512], strides = [1, 1]} : vector<9x512xf32> to vector<1x512xf32>
    %22 = vector.broadcast %21 : vector<1x512xf32> to vector<8x512xf32>
    %23 = arith.mulf %3, %22 : vector<8x512xf32>
    %c511_i32 = arith.constant 511 : i32
    %24 = tpu.dynamic_rotate %3 by %c511_i32 dim 1 : vector<8x512xf32>, i32 -> vector<8x512xf32>
    %25 = vector.extract_strided_slice %4 {offsets = [5, 0], sizes = [1, 512], strides = [1, 1]} : vector<9x512xf32> to vector<1x512xf32>
    %26 = vector.broadcast %25 : vector<1x512xf32> to vector<8x512xf32>
    %27 = arith.mulf %24, %26 : vector<8x512xf32>
    %c497_i32 = arith.constant 497 : i32
    %28 = tpu.dynamic_rotate %3 by %c497_i32 dim 1 : vector<8x512xf32>, i32 -> vector<8x512xf32>
    %29 = vector.extract_strided_slice %4 {offsets = [6, 0], sizes = [1, 512], strides = [1, 1]} : vector<9x512xf32> to vector<1x512xf32>
    %30 = vector.broadcast %29 : vector<1x512xf32> to vector<8x512xf32>
    %31 = arith.mulf %28, %30 : vector<8x512xf32>
    %c496_i32 = arith.constant 496 : i32
    %32 = tpu.dynamic_rotate %3 by %c496_i32 dim 1 : vector<8x512xf32>, i32 -> vector<8x512xf32>
    %33 = vector.extract_strided_slice %4 {offsets = [7, 0], sizes = [1, 512], strides = [1, 1]} : vector<9x512xf32> to vector<1x512xf32>
    %34 = vector.broadcast %33 : vector<1x512xf32> to vector<8x512xf32>
    %35 = arith.mulf %32, %34 : vector<8x512xf32>
    %c495_i32 = arith.constant 495 : i32
    %36 = tpu.dynamic_rotate %3 by %c495_i32 dim 1 : vector<8x512xf32>, i32 -> vector<8x512xf32>
    %37 = vector.extract_strided_slice %4 {offsets = [8, 0], sizes = [1, 512], strides = [1, 1]} : vector<9x512xf32> to vector<1x512xf32>
    %38 = vector.broadcast %37 : vector<1x512xf32> to vector<8x512xf32>
    %39 = arith.mulf %36, %38 : vector<8x512xf32>
    %40 = tpu.concatenate %8, %12, %16, %20, %23, %27, %31, %35, %39 in 0 : vector<8x512xf32>, vector<8x512xf32>, vector<8x512xf32>, vector<8x512xf32>, vector<8x512xf32>, vector<8x512xf32>, vector<8x512xf32>, vector<8x512xf32>, vector<8x512xf32> -> vector<72x512xf32>
    %c0_5 = arith.constant 0 : index
    %c0_6 = arith.constant 0 : index
    %41 = vector.load %arg4[%c0_5, %c0_6] : memref<64x72xf32, #tpu.memory_space<vmem>>, vector<64x72xf32>
    %cst = arith.constant dense<0.000000e+00> : vector<64x512xf32>
    %42 = tpu.matmul %41, %40, %cst {dimension_numbers = #tpu.dot_dimension_numbers<[1], [0], [0], [1], [0, 0, 1, 1], [], []>} : vector<64x72xf32>, vector<72x512xf32>, vector<64x512xf32> -> vector<64x512xf32>
    %c0_7 = arith.constant 0 : index
    %c0_8 = arith.constant 0 : index
    %43 = vector.load %arg5[%c0_7, %c0_8] : memref<64x1xf32, #tpu.memory_space<vmem>>, vector<64x1xf32>
    %44 = vector.broadcast %43 : vector<64x1xf32> to vector<64x512xf32>
    %45 = arith.addf %42, %44 : vector<64x512xf32>
    %cst_9 = arith.constant 0.000000e+00 : f32
    %46 = vector.broadcast %cst_9 : f32 to vector<64x512xf32>
    %47 = arith.cmpf oge, %45, %46 : vector<64x512xf32>
    %cst_10 = arith.constant 0.00999999977 : f32
    %48 = vector.broadcast %cst_10 : f32 to vector<64x512xf32>
    %49 = arith.mulf %48, %45 : vector<64x512xf32>
    %50 = arith.select %47, %45, %49 : vector<64x512xi1>, vector<64x512xf32>
    %c0_11 = arith.constant 0 : index
    %c0_12 = arith.constant 0 : index
    %51 = vector.load %arg6[%c0_11, %c0_12] : memref<72x64xf32, #tpu.memory_space<vmem>>, vector<72x64xf32>
    %cst_13 = arith.constant dense<0.000000e+00> : vector<72x512xf32>
    %52 = tpu.matmul %51, %50, %cst_13 {dimension_numbers = #tpu.dot_dimension_numbers<[1], [0], [0], [1], [0, 0, 1, 1], [], []>} : vector<72x64xf32>, vector<64x512xf32>, vector<72x512xf32> -> vector<72x512xf32>
    %cst_14 = arith.constant 0.000000e+00 : f32
    %53 = vector.broadcast %cst_14 : f32 to vector<8x512xf32>
    %54 = vector.extract_strided_slice %52 {offsets = [0, 0], sizes = [8, 512], strides = [1, 1]} : vector<72x512xf32> to vector<8x512xf32>
    %c17_i32_15 = arith.constant 17 : i32
    %55 = tpu.dynamic_rotate %54 by %c17_i32_15 dim 1 : vector<8x512xf32>, i32 -> vector<8x512xf32>
    %56 = vector.extract_strided_slice %4 {offsets = [0, 0], sizes = [1, 512], strides = [1, 1]} : vector<9x512xf32> to vector<1x512xf32>
    %57 = vector.broadcast %56 : vector<1x512xf32> to vector<8x512xf32>
    %58 = arith.mulf %55, %57 : vector<8x512xf32>
    %59 = arith.addf %53, %58 : vector<8x512xf32>
    %60 = vector.extract_strided_slice %52 {offsets = [8, 0], sizes = [8, 512], strides = [1, 1]} : vector<72x512xf32> to vector<8x512xf32>
    %c16_i32_16 = arith.constant 16 : i32
    %61 = tpu.dynamic_rotate %60 by %c16_i32_16 dim 1 : vector<8x512xf32>, i32 -> vector<8x512xf32>
    %62 = vector.extract_strided_slice %4 {offsets = [1, 0], sizes = [1, 512], strides = [1, 1]} : vector<9x512xf32> to vector<1x512xf32>
    %63 = vector.broadcast %62 : vector<1x512xf32> to vector<8x512xf32>
    %64 = arith.mulf %61, %63 : vector<8x512xf32>
    %65 = arith.addf %59, %64 : vector<8x512xf32>
    %66 = vector.extract_strided_slice %52 {offsets = [16, 0], sizes = [8, 512], strides = [1, 1]} : vector<72x512xf32> to vector<8x512xf32>
    %c15_i32_17 = arith.constant 15 : i32
    %67 = tpu.dynamic_rotate %66 by %c15_i32_17 dim 1 : vector<8x512xf32>, i32 -> vector<8x512xf32>
    %68 = vector.extract_strided_slice %4 {offsets = [2, 0], sizes = [1, 512], strides = [1, 1]} : vector<9x512xf32> to vector<1x512xf32>
    %69 = vector.broadcast %68 : vector<1x512xf32> to vector<8x512xf32>
    %70 = arith.mulf %67, %69 : vector<8x512xf32>
    %71 = arith.addf %65, %70 : vector<8x512xf32>
    %72 = vector.extract_strided_slice %52 {offsets = [24, 0], sizes = [8, 512], strides = [1, 1]} : vector<72x512xf32> to vector<8x512xf32>
    %c1_i32_18 = arith.constant 1 : i32
    %73 = tpu.dynamic_rotate %72 by %c1_i32_18 dim 1 : vector<8x512xf32>, i32 -> vector<8x512xf32>
    %74 = vector.extract_strided_slice %4 {offsets = [3, 0], sizes = [1, 512], strides = [1, 1]} : vector<9x512xf32> to vector<1x512xf32>
    %75 = vector.broadcast %74 : vector<1x512xf32> to vector<8x512xf32>
    %76 = arith.mulf %73, %75 : vector<8x512xf32>
    %77 = arith.addf %71, %76 : vector<8x512xf32>
    %78 = vector.extract_strided_slice %52 {offsets = [32, 0], sizes = [8, 512], strides = [1, 1]} : vector<72x512xf32> to vector<8x512xf32>
    %79 = vector.extract_strided_slice %4 {offsets = [4, 0], sizes = [1, 512], strides = [1, 1]} : vector<9x512xf32> to vector<1x512xf32>
    %80 = vector.broadcast %79 : vector<1x512xf32> to vector<8x512xf32>
    %81 = arith.mulf %78, %80 : vector<8x512xf32>
    %82 = arith.addf %77, %81 : vector<8x512xf32>
    %83 = vector.extract_strided_slice %52 {offsets = [40, 0], sizes = [8, 512], strides = [1, 1]} : vector<72x512xf32> to vector<8x512xf32>
    %c511_i32_19 = arith.constant 511 : i32
    %84 = tpu.dynamic_rotate %83 by %c511_i32_19 dim 1 : vector<8x512xf32>, i32 -> vector<8x512xf32>
    %85 = vector.extract_strided_slice %4 {offsets = [5, 0], sizes = [1, 512], strides = [1, 1]} : vector<9x512xf32> to vector<1x512xf32>
    %86 = vector.broadcast %85 : vector<1x512xf32> to vector<8x512xf32>
    %87 = arith.mulf %84, %86 : vector<8x512xf32>
    %88 = arith.addf %82, %87 : vector<8x512xf32>
    %89 = vector.extract_strided_slice %52 {offsets = [48, 0], sizes = [8, 512], strides = [1, 1]} : vector<72x512xf32> to vector<8x512xf32>
    %c497_i32_20 = arith.constant 497 : i32
    %90 = tpu.dynamic_rotate %89 by %c497_i32_20 dim 1 : vector<8x512xf32>, i32 -> vector<8x512xf32>
    %91 = vector.extract_strided_slice %4 {offsets = [6, 0], sizes = [1, 512], strides = [1, 1]} : vector<9x512xf32> to vector<1x512xf32>
    %92 = vector.broadcast %91 : vector<1x512xf32> to vector<8x512xf32>
    %93 = arith.mulf %90, %92 : vector<8x512xf32>
    %94 = arith.addf %88, %93 : vector<8x512xf32>
    %95 = vector.extract_strided_slice %52 {offsets = [56, 0], sizes = [8, 512], strides = [1, 1]} : vector<72x512xf32> to vector<8x512xf32>
    %c496_i32_21 = arith.constant 496 : i32
    %96 = tpu.dynamic_rotate %95 by %c496_i32_21 dim 1 : vector<8x512xf32>, i32 -> vector<8x512xf32>
    %97 = vector.extract_strided_slice %4 {offsets = [7, 0], sizes = [1, 512], strides = [1, 1]} : vector<9x512xf32> to vector<1x512xf32>
    %98 = vector.broadcast %97 : vector<1x512xf32> to vector<8x512xf32>
    %99 = arith.mulf %96, %98 : vector<8x512xf32>
    %100 = arith.addf %94, %99 : vector<8x512xf32>
    %101 = vector.extract_strided_slice %52 {offsets = [64, 0], sizes = [8, 512], strides = [1, 1]} : vector<72x512xf32> to vector<8x512xf32>
    %c495_i32_22 = arith.constant 495 : i32
    %102 = tpu.dynamic_rotate %101 by %c495_i32_22 dim 1 : vector<8x512xf32>, i32 -> vector<8x512xf32>
    %103 = vector.extract_strided_slice %4 {offsets = [8, 0], sizes = [1, 512], strides = [1, 1]} : vector<9x512xf32> to vector<1x512xf32>
    %104 = vector.broadcast %103 : vector<1x512xf32> to vector<8x512xf32>
    %105 = arith.mulf %102, %104 : vector<8x512xf32>
    %106 = arith.addf %100, %105 : vector<8x512xf32>
    %107 = vector.extract_strided_slice %106 {offsets = [0, 0], sizes = [4, 512], strides = [1, 1]} : vector<8x512xf32> to vector<4x512xf32>
    %108 = math.tanh %107 : vector<4x512xf32>
    %109 = vector.extract_strided_slice %106 {offsets = [4, 0], sizes = [4, 512], strides = [1, 1]} : vector<8x512xf32> to vector<4x512xf32>
    %cst_23 = arith.constant 1.000000e+00 : f32
    %110 = vector.broadcast %cst_23 : f32 to vector<1x512xf32>
    %111 = arith.subf %110, %0 : vector<1x512xf32>
    %112 = vector.extract_strided_slice %1 {offsets = [0, 0], sizes = [4, 512], strides = [1, 1]} : vector<8x512xf32> to vector<4x512xf32>
    %113 = vector.extract_strided_slice %3 {offsets = [0, 0], sizes = [4, 512], strides = [1, 1]} : vector<8x512xf32> to vector<4x512xf32>
    %114 = math.exp %108 : vector<4x512xf32>
    %115 = arith.mulf %112, %114 : vector<4x512xf32>
    %116 = arith.addf %115, %109 : vector<4x512xf32>
    %117 = vector.broadcast %111 : vector<1x512xf32> to vector<4x512xf32>
    %118 = arith.mulf %117, %116 : vector<4x512xf32>
    %119 = arith.addf %113, %118 : vector<4x512xf32>
    %c0_24 = arith.constant 0 : index
    %c0_25 = arith.constant 0 : index
    %120 = vector.load %arg8[%c0_24, %c0_25] : memref<4x512xf32, #tpu.memory_space<vmem>>, vector<4x512xf32>
    tpu.vector_store %arg8[%c0_24, %c0_25], %119 {strides = array<i32>} : memref<4x512xf32, #tpu.memory_space<vmem>>, vector<4x512xf32>,
    %121 = vector.broadcast %111 : vector<1x512xf32> to vector<4x512xf32>
    %122 = arith.mulf %108, %121 : vector<4x512xf32>
    %cst_26 = arith.constant dense<0.000000e+00> : vector<512xf32>
    %123 = vector.multi_reduction <add>, %122, %cst_26 [0] : vector<4x512xf32> to vector<512xf32>
    %124 = vector.shape_cast %123 : vector<512xf32> to vector<1x512xf32>
    %c0_27 = arith.constant 0 : index
    %c0_28 = arith.constant 0 : index
    %125 = vector.load %arg7[%c0_27, %c0_28] : memref<256x16xf32, #tpu.memory_space<vmem>>, vector<256x16xf32>
    %126 = vector.extract_strided_slice %124 {offsets = [0, 0], sizes = [1, 256], strides = [1, 1]} : vector<1x512xf32> to vector<1x256xf32>
    %cst_29 = arith.constant dense<0.000000e+00> : vector<1x16xf32>
    %127 = tpu.matmul %126, %125, %cst_29 {dimension_numbers = #tpu.dot_dimension_numbers<[1], [0], [0], [1], [0, 0, 1, 1], [], []>} : vector<1x256xf32>, vector<256x16xf32>, vector<1x16xf32> -> vector<1x16xf32>
    %128 = vector.extract_strided_slice %124 {offsets = [0, 256], sizes = [1, 256], strides = [1, 1]} : vector<1x512xf32> to vector<1x256xf32>
    %cst_30 = arith.constant dense<0.000000e+00> : vector<1x16xf32>
    %129 = tpu.matmul %128, %125, %cst_30 {dimension_numbers = #tpu.dot_dimension_numbers<[1], [0], [0], [1], [0, 0, 1, 1], [], []>} : vector<1x256xf32>, vector<256x16xf32>, vector<1x16xf32> -> vector<1x16xf32>
    %130 = tpu.concatenate %127, %129 in 0 : vector<1x16xf32>, vector<1x16xf32> -> vector<2x16xf32>
    %c0_31 = arith.constant 0 : index
    %c0_32 = arith.constant 0 : index
    %131 = vector.load %arg9[%c0_31, %c0_32] : memref<2x16xf32, #tpu.memory_space<vmem>>, vector<2x16xf32>
    tpu.vector_store %arg9[%c0_31, %c0_32], %130 {strides = array<i32>} : memref<2x16xf32, #tpu.memory_space<vmem>>, vector<2x16xf32>,
    return
  }
  func.func @transform_0(%arg0: i32) -> (i32, i32) {
    %c0_i32 = arith.constant 0 : i32
    %c0_i32_0 = arith.constant 0 : i32
    return %c0_i32, %arg0 : i32, i32
  }
  func.func @transform_1(%arg0: i32) -> (i32, i32) {
    %c0_i32 = arith.constant 0 : i32
    %c0_i32_0 = arith.constant 0 : i32
    %c0_i32_1 = arith.constant 0 : i32
    return %c0_i32, %c0_i32_0 : i32, i32
  }
  func.func @transform_2(%arg0: i32) -> (i32, i32) {
    %c0_i32 = arith.constant 0 : i32
    %c0_i32_0 = arith.constant 0 : i32
    %c0_i32_1 = arith.constant 0 : i32
    return %c0_i32, %c0_i32_0 : i32, i32
  }
  func.func @transform_3(%arg0: i32) -> (i32, i32) {
    %c0_i32 = arith.constant 0 : i32
    %c0_i32_0 = arith.constant 0 : i32
    %c0_i32_1 = arith.constant 0 : i32
    return %c0_i32, %c0_i32_0 : i32, i32
  }
  func.func @transform_4(%arg0: i32) -> (i32, i32) {
    %c0_i32 = arith.constant 0 : i32
    %c0_i32_0 = arith.constant 0 : i32
    %c0_i32_1 = arith.constant 0 : i32
    return %c0_i32, %c0_i32_0 : i32, i32
  }
  func.func @transform_5(%arg0: i32) -> (i32, i32) {
    %c0_i32 = arith.constant 0 : i32
    %c0_i32_0 = arith.constant 0 : i32
    %c0_i32_1 = arith.constant 0 : i32
    return %c0_i32, %c0_i32_0 : i32, i32
  }
  func.func @transform_6(%arg0: i32) -> (i32, i32) {
    %c0_i32 = arith.constant 0 : i32
    %c0_i32_0 = arith.constant 0 : i32
    %c0_i32_1 = arith.constant 0 : i32
    return %c0_i32, %c0_i32_0 : i32, i32
  }
  func.func @transform_7(%arg0: i32) -> (i32, i32) {
    %c0_i32 = arith.constant 0 : i32
    %c0_i32_0 = arith.constant 0 : i32
    return %c0_i32, %arg0 : i32, i32
  }
  func.func @transform_8(%arg0: i32) -> (i32, i32) {
    %c0_i32 = arith.constant 0 : i32
    %c0_i32_0 = arith.constant 0 : i32
    return %arg0, %c0_i32 : i32, i32
  }
}

</mosaic_0001>

<llo_original>
// kernel: tpu_custom_call.1
$region0: #{tpu_custom_call.1}
  #allocation0 [shape = 'u32[]', space=smem, size = 0x4, offset = 0x4, fixed_abs, tag = 'smem constant byte address 0x4 - core index']
  #allocation1 [shape = 'u32[144,128]{1,0:T(1,128)}', space=vmem, size = 0x12000, scoped, tag = 'internal scratch']
  %s0 = inlined_call_operand.vmem [shape: f32[8,512], index: 0, kind: input, shape index: {}]
  %s1 = inlined_call_operand.vmem [shape: f32[1,512], index: 1, kind: input, shape index: {}]
  %s2 = inlined_call_operand.vmem [shape: f32[9,512], index: 2, kind: input, shape index: {}]
  %s3 = inlined_call_operand.vmem [shape: f32[64,72], index: 3, kind: input, shape index: {}]
  %s4 = inlined_call_operand.vmem [shape: f32[64,1], index: 4, kind: input, shape index: {}]
  %s5 = inlined_call_operand.vmem [shape: f32[72,64], index: 5, kind: input, shape index: {}]
  %s6 = inlined_call_operand.vmem [shape: f32[256,16], index: 6, kind: input, shape index: {}]
  %s7 = inlined_call_operand.hbm [shape: f32[4,512], index: 7, kind: output, shape index: {0}]
  %s8 = inlined_call_operand.hbm [shape: f32[2,16], index: 8, kind: output, shape index: {1}]
  %9 = xla_tuple %s7, %s8
  %s10 = sld [smem:[#allocation0]]
  $region46: #{tpu_custom_call.1} parent=0
    _
  %s12 = ssub.s32 1, %s10
  %s13 = scalar_select 0, %s12, %s10
  $region1: #{tpu_custom_call.1} parent=0
    #allocation2 [shape = 'u8[8192]{0}', space=vmem, size = 0x2000, scoped, tag = 'output window, operand 0, single buffered']
    #allocation3 [shape = 's32[1]{0}', space=sflag, size = 0x4, scoped, tag = 'scoped memory for tpu_custom_call.1']
    #allocation4 [shape = 'u8[1024]{0}', space=vmem, size = 0x400, scoped, tag = 'output window, operand 1, single buffered']
    #allocation5 [shape = 's32[1]{0}', space=sflag, size = 0x4, scoped, tag = 'scoped memory for tpu_custom_call.1']
    %14 = vsyncpa [#allocation3], 0
    %15 = vsyncpa [#allocation5], 0
    // Predicated region
    $region2: #{tpu_custom_call.1} parent=1 // pred_check
      _
    $region3: #{tpu_custom_call.1} parent=1 // pred_check_branch
      %17 = sbr.rel (0) target = $region5
    $region4: #{tpu_custom_call.1} parent=1 // pred_region
      _
    $region5: #{tpu_custom_call.1} parent=1 // pred_fallthru
      _
    // Predicated region
    $region6: #{tpu_custom_call.1} parent=1 // pred_check
      _
    $region7: #{tpu_custom_call.1} parent=1 // pred_check_branch
      %19 = sbr.rel (0) target = $region9
    $region8: #{tpu_custom_call.1} parent=1 // pred_region
      _
    $region9: #{tpu_custom_call.1} parent=1 // pred_fallthru
      _
    // Predicated region
    $region10: #{tpu_custom_call.1} parent=1 // pred_check
      _
    $region11: #{tpu_custom_call.1} parent=1 // pred_check_branch
      %21 = sbr.rel (0) target = $region13
    $region12: #{tpu_custom_call.1} parent=1 // pred_region
      _
    $region13: #{tpu_custom_call.1} parent=1 // pred_fallthru
      _
    // Predicated region
    $region14: #{tpu_custom_call.1} parent=1 // pred_check
      _
    $region15: #{tpu_custom_call.1} parent=1 // pred_check_branch
      %23 = sbr.rel (0) target = $region17
    $region16: #{tpu_custom_call.1} parent=1 // pred_region
      _
    $region17: #{tpu_custom_call.1} parent=1 // pred_fallthru
      _
    // Predicated region
    $region18: #{tpu_custom_call.1} parent=1 // pred_check
      _
    $region19: #{tpu_custom_call.1} parent=1 // pred_check_branch
      %25 = sbr.rel (0) target = $region21
    $region20: #{tpu_custom_call.1} parent=1 // pred_region
      _
    $region21: #{tpu_custom_call.1} parent=1 // pred_fallthru
      _
    // Predicated region
    $region22: #{tpu_custom_call.1} parent=1 // pred_check
      _
    $region23: #{tpu_custom_call.1} parent=1 // pred_check_branch
      %27 = sbr.rel (0) target = $region25
    $region24: #{tpu_custom_call.1} parent=1 // pred_region
      _
    $region25: #{tpu_custom_call.1} parent=1 // pred_fallthru
      _
    // Predicated region
    $region26: #{tpu_custom_call.1} parent=1 // pred_check
      _
    $region27: #{tpu_custom_call.1} parent=1 // pred_check_branch
      %29 = sbr.rel (0) target = $region29
    $region28: #{tpu_custom_call.1} parent=1 // pred_region
      _
    $region29: #{tpu_custom_call.1} parent=1 // pred_fallthru
      _
    %v30 = vld [vmem:[%s1] sm:$0xf]
    %v31 = vld [vmem:[%s0] sm:$0xff]
    %v32 = vld [vmem:[%s0 + $0x8] sm:$0xff]
    %v33 = vld [vmem:[%s0 + $0x10] sm:$0xff]
    %v34 = vld [vmem:[%s0 + $0x18] sm:$0xff]
    %v36 = vlaneseq
    %v37 = vshrl.u32 %v36, 7
    %v38 = vsub.s32 0, %v37
    %v39 = vrot.slane %v30, %v38
    %v40 = vlaneseq
    %v41 = vshrl.u32 %v40, 7
    %v42 = vsub.s32 1, %v41
    %v43 = vrot.slane %v30, %v42
    %v44 = vlaneseq
    %v45 = vshrl.u32 %v44, 7
    %v46 = vsub.s32 2, %v45
    %v47 = vrot.slane %v30, %v46
    %v48 = vlaneseq
    %v49 = vshrl.u32 %v48, 7
    %v50 = vsub.s32 3, %v49
    %v51 = vrot.slane %v30, %v50
    %v56 = vmul.f32 %v31, %v39
    %v57 = vmul.f32 %v32, %v43
    %v58 = vmul.f32 %v33, %v47
    %v59 = vmul.f32 %v34, %v51
    %v60 = vld [vmem:[%s2] sm:$0xff]
    %v61 = vld [vmem:[%s2 + $0x8] sm:$0xff]
    %v62 = vld [vmem:[%s2 + $0x10] sm:$0xff]
    %v63 = vld [vmem:[%s2 + $0x18] sm:$0xff]
    %v64 = vld [vmem:[%s2 + $0x20] sm:$0x1]
    %v65 = vld [vmem:[%s2 + $0x28] sm:$0x1]
    %v66 = vld [vmem:[%s2 + $0x30] sm:$0x1]
    %v67 = vld [vmem:[%s2 + $0x38] sm:$0x1]
    %68 = vrot.lane.b32.xlu0 %v56, 17
    %v69 = vpop.permute.xlu0 %68
    %70 = vrot.lane.b32.xlu0 %v57, 17
    %v71 = vpop.permute.xlu0 %70
    %72 = vrot.lane.b32.xlu0 %v58, 17
    %v73 = vpop.permute.xlu0 %72
    %74 = vrot.lane.b32.xlu0 %v59, 17
    %v75 = vpop.permute.xlu0 %74
    %v76 = vlaneseq
    %v77 = vand.u32 %v76, 127
    %vm78 = vcmp.lt.s32.totalorder %v77, 17
    %v79 = vsel %vm78, %v73, %v75
    %v80 = vsel %vm78, %v71, %v73
    %v81 = vsel %vm78, %v69, %v71
    %v82 = vsel %vm78, %v75, %v69
    %v83 = vlaneseq
    %v84 = vshrl.u32 %v83, 7
    %v85 = vsub.s32 0, %v84
    %v86 = vrot.slane %v60, %v85
    %v87 = vlaneseq
    %v88 = vshrl.u32 %v87, 7
    %v89 = vsub.s32 0, %v88
    %v90 = vrot.slane %v61, %v89
    %v91 = vlaneseq
    %v92 = vshrl.u32 %v91, 7
    %v93 = vsub.s32 0, %v92
    %v94 = vrot.slane %v62, %v93
    %v95 = vlaneseq
    %v96 = vshrl.u32 %v95, 7
    %v97 = vsub.s32 0, %v96
    %v98 = vrot.slane %v63, %v97
    %v99 = vmul.f32 %v82, %v86
    %v100 = vmul.f32 %v81, %v90
    %v101 = vmul.f32 %v80, %v94
    %v102 = vmul.f32 %v79, %v98
    %103 = vrot.lane.b32.xlu0 %v56, 16
    %v104 = vpop.permute.xlu0 %103
    %105 = vrot.lane.b32.xlu0 %v57, 16
    %v106 = vpop.permute.xlu0 %105
    %107 = vrot.lane.b32.xlu0 %v58, 16
    %v108 = vpop.permute.xlu0 %107
    %109 = vrot.lane.b32.xlu0 %v59, 16
    %v110 = vpop.permute.xlu0 %109
    %vm111 = vcmp.lt.s32.totalorder %v77, 16
    %v112 = vsel %vm111, %v108, %v110
    %v113 = vsel %vm111, %v106, %v108
    %v114 = vsel %vm111, %v104, %v106
    %v115 = vsel %vm111, %v110, %v104
    %v116 = vlaneseq
    %v117 = vshrl.u32 %v116, 7
    %v118 = vsub.s32 1, %v117
    %v119 = vrot.slane %v60, %v118
    %v120 = vlaneseq
    %v121 = vshrl.u32 %v120, 7
    %v122 = vsub.s32 1, %v121
    %v123 = vrot.slane %v61, %v122
    %v124 = vlaneseq
    %v125 = vshrl.u32 %v124, 7
    %v126 = vsub.s32 1, %v125
    %v127 = vrot.slane %v62, %v126
    %v128 = vlaneseq
    %v129 = vshrl.u32 %v128, 7
    %v130 = vsub.s32 1, %v129
    %v131 = vrot.slane %v63, %v130
    %v132 = vmul.f32 %v115, %v119
    %v133 = vmul.f32 %v114, %v123
    %v134 = vmul.f32 %v113, %v127
    %v135 = vmul.f32 %v112, %v131
    %136 = vrot.lane.b32.xlu0 %v56, 15
    %v137 = vpop.permute.xlu0 %136
    %138 = vrot.lane.b32.xlu0 %v57, 15
    %v139 = vpop.permute.xlu0 %138
    %140 = vrot.lane.b32.xlu0 %v58, 15
    %v141 = vpop.permute.xlu0 %140
    %142 = vrot.lane.b32.xlu0 %v59, 15
    %v143 = vpop.permute.xlu0 %142
    %vm144 = vcmp.lt.s32.totalorder %v77, 15
    %v145 = vsel %vm144, %v141, %v143
    %v146 = vsel %vm144, %v139, %v141
    %v147 = vsel %vm144, %v137, %v139
    %v148 = vsel %vm144, %v143, %v137
    %v149 = vlaneseq
    %v150 = vshrl.u32 %v149, 7
    %v151 = vsub.s32 2, %v150
    %v152 = vrot.slane %v60, %v151
    %v153 = vlaneseq
    %v154 = vshrl.u32 %v153, 7
    %v155 = vsub.s32 2, %v154
    %v156 = vrot.slane %v61, %v155
    %v157 = vlaneseq
    %v158 = vshrl.u32 %v157, 7
    %v159 = vsub.s32 2, %v158
    %v160 = vrot.slane %v62, %v159
    %v161 = vlaneseq
    %v162 = vshrl.u32 %v161, 7
    %v163 = vsub.s32 2, %v162
    %v164 = vrot.slane %v63, %v163
    %v165 = vmul.f32 %v148, %v152
    %v166 = vmul.f32 %v147, %v156
    %v167 = vmul.f32 %v146, %v160
    %v168 = vmul.f32 %v145, %v164
    %169 = vrot.lane.b32.xlu0 %v56, 1
    %v170 = vpop.permute.xlu0 %169
    %171 = vrot.lane.b32.xlu0 %v57, 1
    %v172 = vpop.permute.xlu0 %171
    %173 = vrot.lane.b32.xlu0 %v58, 1
    %v174 = vpop.permute.xlu0 %173
    %175 = vrot.lane.b32.xlu0 %v59, 1
    %v176 = vpop.permute.xlu0 %175
    %vm177 = vcmp.lt.s32.totalorder %v77, 1
    %v178 = vsel %vm177, %v174, %v176
    %v179 = vsel %vm177, %v172, %v174
    %v180 = vsel %vm177, %v170, %v172
    %v181 = vsel %vm177, %v176, %v170
    %v182 = vlaneseq
    %v183 = vshrl.u32 %v182, 7
    %v184 = vsub.s32 3, %v183
    %v185 = vrot.slane %v60, %v184
    %v186 = vlaneseq
    %v187 = vshrl.u32 %v186, 7
    %v188 = vsub.s32 3, %v187
    %v189 = vrot.slane %v61, %v188
    %v190 = vlaneseq
    %v191 = vshrl.u32 %v190, 7
    %v192 = vsub.s32 3, %v191
    %v193 = vrot.slane %v62, %v192
    %v194 = vlaneseq
    %v195 = vshrl.u32 %v194, 7
    %v196 = vsub.s32 3, %v195
    %v197 = vrot.slane %v63, %v196
    %v198 = vmul.f32 %v181, %v185
    %v199 = vmul.f32 %v180, %v189
    %v200 = vmul.f32 %v179, %v193
    %v201 = vmul.f32 %v178, %v197
    %v202 = vlaneseq
    %v203 = vshrl.u32 %v202, 7
    %v204 = vsub.s32 4, %v203
    %v205 = vrot.slane %v60, %v204
    %v206 = vlaneseq
    %v207 = vshrl.u32 %v206, 7
    %v208 = vsub.s32 4, %v207
    %v209 = vrot.slane %v61, %v208
    %v210 = vlaneseq
    %v211 = vshrl.u32 %v210, 7
    %v212 = vsub.s32 4, %v211
    %v213 = vrot.slane %v62, %v212
    %v214 = vlaneseq
    %v215 = vshrl.u32 %v214, 7
    %v216 = vsub.s32 4, %v215
    %v217 = vrot.slane %v63, %v216
    %v218 = vmul.f32 %v56, %v205
    %v219 = vmul.f32 %v57, %v209
    %v220 = vmul.f32 %v58, %v213
    %v221 = vmul.f32 %v59, %v217
    %222 = vrot.lane.b32.xlu0 %v56, 127
    %v223 = vpop.permute.xlu0 %222
    %224 = vrot.lane.b32.xlu0 %v57, 127
    %v225 = vpop.permute.xlu0 %224
    %226 = vrot.lane.b32.xlu0 %v58, 127
    %v227 = vpop.permute.xlu0 %226
    %228 = vrot.lane.b32.xlu0 %v59, 127
    %v229 = vpop.permute.xlu0 %228
    %vm230 = vcmp.lt.s32.totalorder %v77, 127
    %v231 = vsel %vm230, %v227, %v229
    %v232 = vsel %vm230, %v225, %v227
    %v233 = vsel %vm230, %v223, %v225
    %v234 = vsel %vm230, %v229, %v223
    %v235 = vlaneseq
    %v236 = vshrl.u32 %v235, 7
    %v237 = vsub.s32 5, %v236
    %v238 = vrot.slane %v60, %v237
    %v239 = vlaneseq
    %v240 = vshrl.u32 %v239, 7
    %v241 = vsub.s32 5, %v240
    %v242 = vrot.slane %v61, %v241
    %v243 = vlaneseq
    %v244 = vshrl.u32 %v243, 7
    %v245 = vsub.s32 5, %v244
    %v246 = vrot.slane %v62, %v245
    %v247 = vlaneseq
    %v248 = vshrl.u32 %v247, 7
    %v249 = vsub.s32 5, %v248
    %v250 = vrot.slane %v63, %v249
    %v251 = vmul.f32 %v233, %v238
    %v252 = vmul.f32 %v232, %v242
    %v253 = vmul.f32 %v231, %v246
    %v254 = vmul.f32 %v234, %v250
    %255 = vrot.lane.b32.xlu0 %v56, 113
    %v256 = vpop.permute.xlu0 %255
    %257 = vrot.lane.b32.xlu0 %v57, 113
    %v258 = vpop.permute.xlu0 %257
    %259 = vrot.lane.b32.xlu0 %v58, 113
    %v260 = vpop.permute.xlu0 %259
    %261 = vrot.lane.b32.xlu0 %v59, 113
    %v262 = vpop.permute.xlu0 %261
    %vm263 = vcmp.lt.s32.totalorder %v77, 113
    %v264 = vsel %vm263, %v260, %v262
    %v265 = vsel %vm263, %v258, %v260
    %v266 = vsel %vm263, %v256, %v258
    %v267 = vsel %vm263, %v262, %v256
    %v268 = vlaneseq
    %v269 = vshrl.u32 %v268, 7
    %v270 = vsub.s32 6, %v269
    %v271 = vrot.slane %v60, %v270
    %v272 = vlaneseq
    %v273 = vshrl.u32 %v272, 7
    %v274 = vsub.s32 6, %v273
    %v275 = vrot.slane %v61, %v274
    %v276 = vlaneseq
    %v277 = vshrl.u32 %v276, 7
    %v278 = vsub.s32 6, %v277
    %v279 = vrot.slane %v62, %v278
    %v280 = vlaneseq
    %v281 = vshrl.u32 %v280, 7
    %v282 = vsub.s32 6, %v281
    %v283 = vrot.slane %v63, %v282
    %v284 = vmul.f32 %v266, %v271
    %v285 = vmul.f32 %v265, %v275
    %v286 = vmul.f32 %v264, %v279
    %v287 = vmul.f32 %v267, %v283
    %288 = vrot.lane.b32.xlu0 %v56, 112
    %v289 = vpop.permute.xlu0 %288
    %290 = vrot.lane.b32.xlu0 %v57, 112
    %v291 = vpop.permute.xlu0 %290
    %292 = vrot.lane.b32.xlu0 %v58, 112
    %v293 = vpop.permute.xlu0 %292
    %294 = vrot.lane.b32.xlu0 %v59, 112
    %v295 = vpop.permute.xlu0 %294
    %vm296 = vcmp.lt.s32.totalorder %v77, 112
    %v297 = vsel %vm296, %v293, %v295
    %v298 = vsel %vm296, %v291, %v293
    %v299 = vsel %vm296, %v289, %v291
    %v300 = vsel %vm296, %v295, %v289
    %v301 = vlaneseq
    %v302 = vshrl.u32 %v301, 7
    %v303 = vsub.s32 7, %v302
    %v304 = vrot.slane %v60, %v303
    %v305 = vlaneseq
    %v306 = vshrl.u32 %v305, 7
    %v307 = vsub.s32 7, %v306
    %v308 = vrot.slane %v61, %v307
    %v309 = vlaneseq
    %v310 = vshrl.u32 %v309, 7
    %v311 = vsub.s32 7, %v310
    %v312 = vrot.slane %v62, %v311
    %v313 = vlaneseq
    %v314 = vshrl.u32 %v313, 7
    %v315 = vsub.s32 7, %v314
    %v316 = vrot.slane %v63, %v315
    %v317 = vmul.f32 %v299, %v304
    %v318 = vmul.f32 %v298, %v308
    %v319 = vmul.f32 %v297, %v312
    %v320 = vmul.f32 %v300, %v316
    %321 = vrot.lane.b32.xlu0 %v56, 111
    %v322 = vpop.permute.xlu0 %321
    %323 = vrot.lane.b32.xlu0 %v57, 111
    %v324 = vpop.permute.xlu0 %323
    %325 = vrot.lane.b32.xlu0 %v58, 111
    %v326 = vpop.permute.xlu0 %325
    %327 = vrot.lane.b32.xlu0 %v59, 111
    %v328 = vpop.permute.xlu0 %327
    %vm329 = vcmp.lt.s32.totalorder %v77, 111
    %v330 = vsel %vm329, %v326, %v328
    %v331 = vsel %vm329, %v324, %v326
    %v332 = vsel %vm329, %v322, %v324
    %v333 = vsel %vm329, %v328, %v322
    %v334 = vlaneseq
    %v335 = vshrl.u32 %v334, 7
    %v336 = vsub.s32 0, %v335
    %v337 = vrot.slane %v64, %v336
    %v338 = vlaneseq
    %v339 = vshrl.u32 %v338, 7
    %v340 = vsub.s32 0, %v339
    %v341 = vrot.slane %v65, %v340
    %v342 = vlaneseq
    %v343 = vshrl.u32 %v342, 7
    %v344 = vsub.s32 0, %v343
    %v345 = vrot.slane %v66, %v344
    %v346 = vlaneseq
    %v347 = vshrl.u32 %v346, 7
    %v348 = vsub.s32 0, %v347
    %v349 = vrot.slane %v67, %v348
    %v350 = vmul.f32 %v332, %v337
    %v351 = vmul.f32 %v331, %v341
    %v352 = vmul.f32 %v330, %v345
    %v353 = vmul.f32 %v333, %v349
    %v354 = vld [vmem:[%s3] sm:$0xff]
    %v355 = vld [vmem:[%s3 + $0x8] sm:$0xff]
    %v356 = vld [vmem:[%s3 + $0x10] sm:$0xff]
    %v357 = vld [vmem:[%s3 + $0x18] sm:$0xff]
    %v358 = vld [vmem:[%s3 + $0x20] sm:$0xff]
    %v359 = vld [vmem:[%s3 + $0x28] sm:$0xff]
    %v360 = vld [vmem:[%s3 + $0x30] sm:$0xff]
    %v361 = vld [vmem:[%s3 + $0x38] sm:$0xff]
    %v362 = vld [vmem:[%s4] sm:$0xff]
    %v363 = vld [vmem:[%s4 + $0x8] sm:$0xff]
    %v364 = vld [vmem:[%s4 + $0x10] sm:$0xff]
    %v365 = vld [vmem:[%s4 + $0x18] sm:$0xff]
    %v366 = vld [vmem:[%s4 + $0x20] sm:$0xff]
    %v367 = vld [vmem:[%s4 + $0x28] sm:$0xff]
    %v368 = vld [vmem:[%s4 + $0x30] sm:$0xff]
    %v369 = vld [vmem:[%s4 + $0x38] sm:$0xff]
    %371 = vset.pattern.permute.xlu0 0
    %372 = vperm.xlu0 %371, %v362
    %v373 = vpop.permute.xlu0 %372
    %376 = vset.pattern.permute.xlu0 0
    %377 = vperm.xlu0 %376, %v363
    %v378 = vpop.permute.xlu0 %377
    %381 = vset.pattern.permute.xlu0 0
    %382 = vperm.xlu0 %381, %v364
    %v383 = vpop.permute.xlu0 %382
    %386 = vset.pattern.permute.xlu0 0
    %387 = vperm.xlu0 %386, %v365
    %v388 = vpop.permute.xlu0 %387
    %391 = vset.pattern.permute.xlu0 0
    %392 = vperm.xlu0 %391, %v366
    %v393 = vpop.permute.xlu0 %392
    %396 = vset.pattern.permute.xlu0 0
    %397 = vperm.xlu0 %396, %v367
    %v398 = vpop.permute.xlu0 %397
    %401 = vset.pattern.permute.xlu0 0
    %402 = vperm.xlu0 %401, %v368
    %v403 = vpop.permute.xlu0 %402
    %406 = vset.pattern.permute.xlu0 0
    %407 = vperm.xlu0 %406, %v369
    %v408 = vpop.permute.xlu0 %407
    %vm410 = vcmask 588800
    %v412 = vsel %vm410, %v354, 0
    %v415 = vsel %vm410, %v355, 0
    %v418 = vsel %vm410, %v356, 0
    %v421 = vsel %vm410, %v357, 0
    %v424 = vsel %vm410, %v358, 0
    %v427 = vsel %vm410, %v359, 0
    %v430 = vsel %vm410, %v360, 0
    %v433 = vsel %vm410, %v361, 0
    %435 = vmatprep.subr.mxu0 0.0
    %436 = vmatpush1.msra.mxu0 0.0
    %437 = vmatprep.subr.mxu0 0.0
    %438 = vmatpush1.msra.mxu0 0.0
    %439 = vmatprep.subr.mxu0 0.0
    %440 = vmatpush1.msra.mxu0 0.0
    %441 = vmatprep.subr.mxu0 0.0
    %442 = vmatpush1.msra.mxu0 0.0
    %443 = vmatprep.subr.mxu0 0.0
    %444 = vmatpush1.msra.mxu0 0.0
    %445 = vmatprep.subr.mxu0 0.0
    %446 = vmatpush1.msra.mxu0 0.0
    %447 = vmatprep.subr.mxu0 0.0
    %448 = vmatpush1.msra.mxu0 0.0
    %449 = vmatprep.subr.mxu0 %v351
    %450 = vmatpush1.msra.mxu0 %v350
    %451 = vmatprep.subr.mxu0 %v318
    %452 = vmatpush1.msra.mxu0 %v317
    %453 = vmatprep.subr.mxu0 %v285
    %454 = vmatpush1.msra.mxu0 %v284
    %455 = vmatprep.subr.mxu0 %v252
    %456 = vmatpush1.msra.mxu0 %v251
    %457 = vmatprep.subr.mxu0 %v219
    %458 = vmatpush1.msra.mxu0 %v218
    %459 = vmatprep.subr.mxu0 %v199
    %460 = vmatpush1.msra.mxu0 %v198
    %461 = vmatprep.subr.mxu0 %v166
    %462 = vmatpush1.msra.mxu0 %v165
    %463 = vmatprep.subr.mxu0 %v133
    %464 = vmatpush1.msra.mxu0 %v132
    %465 = vmatprep.subr.mxu0 %v100
    %466 = vmatpush1.msra.mxu0 %v99
    %467 = vmatprep.subr.mxu0 0.0
    %468 = vmatpush2.msra.mxu0 0.0
    %469 = vmatprep.subr.mxu0 0.0
    %470 = vmatpush2.msra.mxu0 0.0
    %471 = vmatprep.subr.mxu0 0.0
    %472 = vmatpush2.msra.mxu0 0.0
    %473 = vmatprep.subr.mxu0 0.0
    %474 = vmatpush2.msra.mxu0 0.0
    %475 = vmatprep.subr.mxu0 0.0
    %476 = vmatpush2.msra.mxu0 0.0
    %477 = vmatprep.subr.mxu0 0.0
    %478 = vmatpush2.msra.mxu0 0.0
    %479 = vmatprep.subr.mxu0 0.0
    %480 = vmatpush2.msra.mxu0 0.0
    %481 = vmatprep.subr.mxu0 0.0
    %482 = vmatpush2.msra.mxu0 0.0
    %483 = vmatprep.subr.mxu0 0.0
    %484 = vmatpush2.msra.mxu0 0.0
    %485 = vmatprep.subr.mxu0 0.0
    %486 = vmatpush2.msra.mxu0 0.0
    %487 = vmatprep.subr.mxu0 0.0
    %488 = vmatpush2.msra.mxu0 0.0
    %489 = vmatprep.subr.mxu0 0.0
    %490 = vmatpush2.msra.mxu0 0.0
    %491 = vmatprep.subr.mxu0 0.0
    %492 = vmatpush2.msra.mxu0 0.0
    %493 = vmatprep.subr.mxu0 0.0
    %494 = vmatpush2.msra.mxu0 0.0
    %495 = vmatprep.subr.mxu0 0.0
    %496 = vmatpush2.msra.mxu0 0.0
    %497 = vmatprep.subr.mxu0 0.0
    %498 = vmatpush2.msra.mxu0 0.0
    %499 = vmatprep.mubr.f32.mxu0 0.0
    %500 = vmatmul.mubr.f32.gmra.mxu0 %v412
    %v501 = vpop.f32.mrf.mxu0
    %v502 = vadd.f32 %v373, %v501
    %v503 = vpop.f32.mrf.mxu0
    %v504 = vadd.f32 %v373, %v503
    %505 = vmatprep.mubr.f32.mxu0 0.0
    %506 = vmatmul.mubr.f32.gmra.mxu0 %v415
    %v507 = vpop.f32.mrf.mxu0
    %v508 = vadd.f32 %v378, %v507
    %v509 = vpop.f32.mrf.mxu0
    %v510 = vadd.f32 %v378, %v509
    %511 = vmatprep.mubr.f32.mxu0 0.0
    %512 = vmatmul.mubr.f32.gmra.mxu0 %v418
    %v513 = vpop.f32.mrf.mxu0
    %v514 = vadd.f32 %v383, %v513
    %v515 = vpop.f32.mrf.mxu0
    %v516 = vadd.f32 %v383, %v515
    %517 = vmatprep.mubr.f32.mxu0 0.0
    %518 = vmatmul.mubr.f32.gmra.mxu0 %v421
    %v519 = vpop.f32.mrf.mxu0
    %v520 = vadd.f32 %v388, %v519
    %v521 = vpop.f32.mrf.mxu0
    %v522 = vadd.f32 %v388, %v521
    %523 = vmatprep.mubr.f32.mxu0 0.0
    %524 = vmatmul.mubr.f32.gmra.mxu0 %v424
    %v525 = vpop.f32.mrf.mxu0
    %v526 = vadd.f32 %v393, %v525
    %v527 = vpop.f32.mrf.mxu0
    %v528 = vadd.f32 %v393, %v527
    %529 = vmatprep.mubr.f32.mxu0 0.0
    %530 = vmatmul.mubr.f32.gmra.mxu0 %v427
    %v531 = vpop.f32.mrf.mxu0
    %v532 = vadd.f32 %v398, %v531
    %v533 = vpop.f32.mrf.mxu0
    %v534 = vadd.f32 %v398, %v533
    %535 = vmatprep.mubr.f32.mxu0 0.0
    %536 = vmatmul.mubr.f32.gmra.mxu0 %v430
    %v537 = vpop.f32.mrf.mxu0
    %v538 = vadd.f32 %v403, %v537
    %v539 = vpop.f32.mrf.mxu0
    %v540 = vadd.f32 %v403, %v539
    %541 = vmatprep.mubr.f32.mxu0 0.0
    %542 = vmatmul.mubr.f32.gmra.mxu0 %v433
    %v543 = vpop.f32.mrf.mxu0
    %v544 = vadd.f32 %v408, %v543
    %v545 = vpop.f32.mrf.mxu0
    %v546 = vadd.f32 %v408, %v545
    %547 = vdwg.mxu0
    %548 = vmatprep.subr.mxu0 0.0
    %549 = vmatpush1.msra.mxu0 0.0
    %550 = vmatprep.subr.mxu0 0.0
    %551 = vmatpush1.msra.mxu0 0.0
    %552 = vmatprep.subr.mxu0 0.0
    %553 = vmatpush1.msra.mxu0 0.0
    %554 = vmatprep.subr.mxu0 0.0
    %555 = vmatpush1.msra.mxu0 0.0
    %556 = vmatprep.subr.mxu0 0.0
    %557 = vmatpush1.msra.mxu0 0.0
    %558 = vmatprep.subr.mxu0 0.0
    %559 = vmatpush1.msra.mxu0 0.0
    %560 = vmatprep.subr.mxu0 0.0
    %561 = vmatpush1.msra.mxu0 0.0
    %562 = vmatprep.subr.mxu0 %v353
    %563 = vmatpush1.msra.mxu0 %v352
    %564 = vmatprep.subr.mxu0 %v320
    %565 = vmatpush1.msra.mxu0 %v319
    %566 = vmatprep.subr.mxu0 %v287
    %567 = vmatpush1.msra.mxu0 %v286
    %568 = vmatprep.subr.mxu0 %v254
    %569 = vmatpush1.msra.mxu0 %v253
    %570 = vmatprep.subr.mxu0 %v221
    %571 = vmatpush1.msra.mxu0 %v220
    %572 = vmatprep.subr.mxu0 %v201
    %573 = vmatpush1.msra.mxu0 %v200
    %574 = vmatprep.subr.mxu0 %v168
    %575 = vmatpush1.msra.mxu0 %v167
    %576 = vmatprep.subr.mxu0 %v135
    %577 = vmatpush1.msra.mxu0 %v134
    %578 = vmatprep.subr.mxu0 %v102
    %579 = vmatpush1.msra.mxu0 %v101
    %580 = vmatprep.subr.mxu0 0.0
    %581 = vmatpush2.msra.mxu0 0.0
    %582 = vmatprep.subr.mxu0 0.0
    %583 = vmatpush2.msra.mxu0 0.0
    %584 = vmatprep.subr.mxu0 0.0
    %585 = vmatpush2.msra.mxu0 0.0
    %586 = vmatprep.subr.mxu0 0.0
    %587 = vmatpush2.msra.mxu0 0.0
    %588 = vmatprep.subr.mxu0 0.0
    %589 = vmatpush2.msra.mxu0 0.0
    %590 = vmatprep.subr.mxu0 0.0
    %591 = vmatpush2.msra.mxu0 0.0
    %592 = vmatprep.subr.mxu0 0.0
    %593 = vmatpush2.msra.mxu0 0.0
    %594 = vmatprep.subr.mxu0 0.0
    %595 = vmatpush2.msra.mxu0 0.0
    %596 = vmatprep.subr.mxu0 0.0
    %597 = vmatpush2.msra.mxu0 0.0
    %598 = vmatprep.subr.mxu0 0.0
    %599 = vmatpush2.msra.mxu0 0.0
    %600 = vmatprep.subr.mxu0 0.0
    %601 = vmatpush2.msra.mxu0 0.0
    %602 = vmatprep.subr.mxu0 0.0
    %603 = vmatpush2.msra.mxu0 0.0
    %604 = vmatprep.subr.mxu0 0.0
    %605 = vmatpush2.msra.mxu0 0.0
    %606 = vmatprep.subr.mxu0 0.0
    %607 = vmatpush2.msra.mxu0 0.0
    %608 = vmatprep.subr.mxu0 0.0
    %609 = vmatpush2.msra.mxu0 0.0
    %610 = vmatprep.subr.mxu0 0.0
    %611 = vmatpush2.msra.mxu0 0.0
    %612 = vmatprep.mubr.f32.mxu0 0.0
    %613 = vmatmul.mubr.f32.gmra.mxu0 %v412
    %v614 = vpop.f32.mrf.mxu0
    %v615 = vadd.f32 %v373, %v614
    %v616 = vpop.f32.mrf.mxu0
    %v617 = vadd.f32 %v373, %v616
    %618 = vmatprep.mubr.f32.mxu0 0.0
    %619 = vmatmul.mubr.f32.gmra.mxu0 %v415
    %v620 = vpop.f32.mrf.mxu0
    %v621 = vadd.f32 %v378, %v620
    %v622 = vpop.f32.mrf.mxu0
    %v623 = vadd.f32 %v378, %v622
    %624 = vmatprep.mubr.f32.mxu0 0.0
    %625 = vmatmul.mubr.f32.gmra.mxu0 %v418
    %v626 = vpop.f32.mrf.mxu0
    %v627 = vadd.f32 %v383, %v626
    %v628 = vpop.f32.mrf.mxu0
    %v629 = vadd.f32 %v383, %v628
    %630 = vmatprep.mubr.f32.mxu0 0.0
    %631 = vmatmul.mubr.f32.gmra.mxu0 %v421
    %v632 = vpop.f32.mrf.mxu0
    %v633 = vadd.f32 %v388, %v632
    %v634 = vpop.f32.mrf.mxu0
    %v635 = vadd.f32 %v388, %v634
    %636 = vmatprep.mubr.f32.mxu0 0.0
    %637 = vmatmul.mubr.f32.gmra.mxu0 %v424
    %v638 = vpop.f32.mrf.mxu0
    %v639 = vadd.f32 %v393, %v638
    %v640 = vpop.f32.mrf.mxu0
    %v641 = vadd.f32 %v393, %v640
    %642 = vmatprep.mubr.f32.mxu0 0.0
    %643 = vmatmul.mubr.f32.gmra.mxu0 %v427
    %v644 = vpop.f32.mrf.mxu0
    %v645 = vadd.f32 %v398, %v644
    %v646 = vpop.f32.mrf.mxu0
    %v647 = vadd.f32 %v398, %v646
    %648 = vmatprep.mubr.f32.mxu0 0.0
    %649 = vmatmul.mubr.f32.gmra.mxu0 %v430
    %v650 = vpop.f32.mrf.mxu0
    %v651 = vadd.f32 %v403, %v650
    %v652 = vpop.f32.mrf.mxu0
    %v653 = vadd.f32 %v403, %v652
    %654 = vmatprep.mubr.f32.mxu0 0.0
    %655 = vmatmul.mubr.f32.gmra.mxu0 %v433
    %v656 = vpop.f32.mrf.mxu0
    %v657 = vadd.f32 %v408, %v656
    %v658 = vpop.f32.mrf.mxu0
    %v659 = vadd.f32 %v408, %v658
    %660 = vdwg.mxu0
    %vm661 = vcmp.ge.f32.partialorder %v502, 0.0
    %vm662 = vcmp.ge.f32.partialorder %v504, 0.0
    %vm663 = vcmp.ge.f32.partialorder %v615, 0.0
    %vm664 = vcmp.ge.f32.partialorder %v617, 0.0
    %vm665 = vcmp.ge.f32.partialorder %v508, 0.0
    %vm666 = vcmp.ge.f32.partialorder %v510, 0.0
    %vm667 = vcmp.ge.f32.partialorder %v621, 0.0
    %vm668 = vcmp.ge.f32.partialorder %v623, 0.0
    %vm669 = vcmp.ge.f32.partialorder %v514, 0.0
    %vm670 = vcmp.ge.f32.partialorder %v516, 0.0
    %vm671 = vcmp.ge.f32.partialorder %v627, 0.0
    %vm672 = vcmp.ge.f32.partialorder %v629, 0.0
    %vm673 = vcmp.ge.f32.partialorder %v520, 0.0
    %vm674 = vcmp.ge.f32.partialorder %v522, 0.0
    %vm675 = vcmp.ge.f32.partialorder %v633, 0.0
    %vm676 = vcmp.ge.f32.partialorder %v635, 0.0
    %vm677 = vcmp.ge.f32.partialorder %v526, 0.0
    %vm678 = vcmp.ge.f32.partialorder %v528, 0.0
    %vm679 = vcmp.ge.f32.partialorder %v639, 0.0
    %vm680 = vcmp.ge.f32.partialorder %v641, 0.0
    %vm681 = vcmp.ge.f32.partialorder %v532, 0.0
    %vm682 = vcmp.ge.f32.partialorder %v534, 0.0
    %vm683 = vcmp.ge.f32.partialorder %v645, 0.0
    %vm684 = vcmp.ge.f32.partialorder %v647, 0.0
    %vm685 = vcmp.ge.f32.partialorder %v538, 0.0
    %vm686 = vcmp.ge.f32.partialorder %v540, 0.0
    %vm687 = vcmp.ge.f32.partialorder %v651, 0.0
    %vm688 = vcmp.ge.f32.partialorder %v653, 0.0
    %vm689 = vcmp.ge.f32.partialorder %v544, 0.0
    %vm690 = vcmp.ge.f32.partialorder %v546, 0.0
    %vm691 = vcmp.ge.f32.partialorder %v657, 0.0
    %vm692 = vcmp.ge.f32.partialorder %v659, 0.0
    %v693 = vmul.f32 %v502, 0.01
    %v694 = vmul.f32 %v504, 0.01
    %v695 = vmul.f32 %v615, 0.01
    %v696 = vmul.f32 %v617, 0.01
    %v697 = vmul.f32 %v508, 0.01
    %v698 = vmul.f32 %v510, 0.01
    %v699 = vmul.f32 %v621, 0.01
    %v700 = vmul.f32 %v623, 0.01
    %v701 = vmul.f32 %v514, 0.01
    %v702 = vmul.f32 %v516, 0.01
    %v703 = vmul.f32 %v627, 0.01
    %v704 = vmul.f32 %v629, 0.01
    %v705 = vmul.f32 %v520, 0.01
    %v706 = vmul.f32 %v522, 0.01
    %v707 = vmul.f32 %v633, 0.01
    %v708 = vmul.f32 %v635, 0.01
    %v709 = vmul.f32 %v526, 0.01
    %v710 = vmul.f32 %v528, 0.01
    %v711 = vmul.f32 %v639, 0.01
    %v712 = vmul.f32 %v641, 0.01
    %v713 = vmul.f32 %v532, 0.01
    %v714 = vmul.f32 %v534, 0.01
    %v715 = vmul.f32 %v645, 0.01
    %v716 = vmul.f32 %v647, 0.01
    %v717 = vmul.f32 %v538, 0.01
    %v718 = vmul.f32 %v540, 0.01
    %v719 = vmul.f32 %v651, 0.01
    %v720 = vmul.f32 %v653, 0.01
    %v721 = vmul.f32 %v544, 0.01
    %v722 = vmul.f32 %v546, 0.01
    %v723 = vmul.f32 %v657, 0.01
    %v724 = vmul.f32 %v659, 0.01
    %v725 = vsel %vm661, %v502, %v693
    %v726 = vsel %vm662, %v504, %v694
    %v727 = vsel %vm663, %v615, %v695
    %v728 = vsel %vm664, %v617, %v696
    %v729 = vsel %vm665, %v508, %v697
    %v730 = vsel %vm666, %v510, %v698
    %v731 = vsel %vm667, %v621, %v699
    %v732 = vsel %vm668, %v623, %v700
    %v733 = vsel %vm669, %v514, %v701
    %v734 = vsel %vm670, %v516, %v702
    %v735 = vsel %vm671, %v627, %v703
    %v736 = vsel %vm672, %v629, %v704
    %v737 = vsel %vm673, %v520, %v705
    %v738 = vsel %vm674, %v522, %v706
    %v739 = vsel %vm675, %v633, %v707
    %v740 = vsel %vm676, %v635, %v708
    %v741 = vsel %vm677, %v526, %v709
    %v742 = vsel %vm678, %v528, %v710
    %v743 = vsel %vm679, %v639, %v711
    %v744 = vsel %vm680, %v641, %v712
    %v745 = vsel %vm681, %v532, %v713
    %v746 = vsel %vm682, %v534, %v714
    %v747 = vsel %vm683, %v645, %v715
    %v748 = vsel %vm684, %v647, %v716
    %v749 = vsel %vm685, %v538, %v717
    %v750 = vsel %vm686, %v540, %v718
    %v751 = vsel %vm687, %v651, %v719
    %v752 = vsel %vm688, %v653, %v720
    %v753 = vsel %vm689, %v544, %v721
    %v754 = vsel %vm690, %v546, %v722
    %v755 = vsel %vm691, %v657, %v723
    %v756 = vsel %vm692, %v659, %v724
    %v757 = vld [vmem:[%s5] sm:$0xff]
    %v758 = vld [vmem:[%s5 + $0x8] sm:$0xff]
    %v759 = vld [vmem:[%s5 + $0x10] sm:$0xff]
    %v760 = vld [vmem:[%s5 + $0x18] sm:$0xff]
    %v761 = vld [vmem:[%s5 + $0x20] sm:$0xff]
    %v762 = vld [vmem:[%s5 + $0x28] sm:$0xff]
    %v763 = vld [vmem:[%s5 + $0x30] sm:$0xff]
    %v764 = vld [vmem:[%s5 + $0x38] sm:$0xff]
    %v765 = vld [vmem:[%s5 + $0x40] sm:$0xff]
    %vm766 = vcmask 523264
    %v768 = vsel %vm766, %v757, 0
    %v771 = vsel %vm766, %v758, 0
    %v774 = vsel %vm766, %v759, 0
    %v777 = vsel %vm766, %v760, 0
    %v780 = vsel %vm766, %v761, 0
    %v783 = vsel %vm766, %v762, 0
    %v786 = vsel %vm766, %v763, 0
    %v789 = vsel %vm766, %v764, 0
    %v792 = vsel %vm766, %v765, 0
    %794 = vmatprep.subr.mxu0 0.0
    %795 = vmatpush1.msra.mxu0 0.0
    %796 = vmatprep.subr.mxu0 0.0
    %797 = vmatpush1.msra.mxu0 0.0
    %798 = vmatprep.subr.mxu0 0.0
    %799 = vmatpush1.msra.mxu0 0.0
    %800 = vmatprep.subr.mxu0 0.0
    %801 = vmatpush1.msra.mxu0 0.0
    %802 = vmatprep.subr.mxu0 0.0
    %803 = vmatpush1.msra.mxu0 0.0
    %804 = vmatprep.subr.mxu0 0.0
    %805 = vmatpush1.msra.mxu0 0.0
    %806 = vmatprep.subr.mxu0 0.0
    %807 = vmatpush1.msra.mxu0 0.0
    %808 = vmatprep.subr.mxu0 0.0
    %809 = vmatpush1.msra.mxu0 0.0
    %810 = vmatprep.subr.mxu0 %v754
    %811 = vmatpush1.msra.mxu0 %v753
    %812 = vmatprep.subr.mxu0 %v750
    %813 = vmatpush1.msra.mxu0 %v749
    %814 = vmatprep.subr.mxu0 %v746
    %815 = vmatpush1.msra.mxu0 %v745
    %816 = vmatprep.subr.mxu0 %v742
    %817 = vmatpush1.msra.mxu0 %v741
    %818 = vmatprep.subr.mxu0 %v738
    %819 = vmatpush1.msra.mxu0 %v737
    %820 = vmatprep.subr.mxu0 %v734
    %821 = vmatpush1.msra.mxu0 %v733
    %822 = vmatprep.subr.mxu0 %v730
    %823 = vmatpush1.msra.mxu0 %v729
    %824 = vmatprep.subr.mxu0 %v726
    %825 = vmatpush1.msra.mxu0 %v725
    %826 = vmatprep.subr.mxu0 0.0
    %827 = vmatpush2.msra.mxu0 0.0
    %828 = vmatprep.subr.mxu0 0.0
    %829 = vmatpush2.msra.mxu0 0.0
    %830 = vmatprep.subr.mxu0 0.0
    %831 = vmatpush2.msra.mxu0 0.0
    %832 = vmatprep.subr.mxu0 0.0
    %833 = vmatpush2.msra.mxu0 0.0
    %834 = vmatprep.subr.mxu0 0.0
    %835 = vmatpush2.msra.mxu0 0.0
    %836 = vmatprep.subr.mxu0 0.0
    %837 = vmatpush2.msra.mxu0 0.0
    %838 = vmatprep.subr.mxu0 0.0
    %839 = vmatpush2.msra.mxu0 0.0
    %840 = vmatprep.subr.mxu0 0.0
    %841 = vmatpush2.msra.mxu0 0.0
    %842 = vmatprep.subr.mxu0 0.0
    %843 = vmatpush2.msra.mxu0 0.0
    %844 = vmatprep.subr.mxu0 0.0
    %845 = vmatpush2.msra.mxu0 0.0
    %846 = vmatprep.subr.mxu0 0.0
    %847 = vmatpush2.msra.mxu0 0.0
    %848 = vmatprep.subr.mxu0 0.0
    %849 = vmatpush2.msra.mxu0 0.0
    %850 = vmatprep.subr.mxu0 0.0
    %851 = vmatpush2.msra.mxu0 0.0
    %852 = vmatprep.subr.mxu0 0.0
    %853 = vmatpush2.msra.mxu0 0.0
    %854 = vmatprep.subr.mxu0 0.0
    %855 = vmatpush2.msra.mxu0 0.0
    %856 = vmatprep.subr.mxu0 0.0
    %857 = vmatpush2.msra.mxu0 0.0
    %858 = vmatprep.mubr.f32.mxu0 0.0
    %859 = vmatmul.mubr.f32.gmra.mxu0 %v768
    %v860 = vpop.f32.mrf.mxu0
    %v861 = vadd.f32 0.0, %v860
    %v862 = vpop.f32.mrf.mxu0
    %v863 = vadd.f32 0.0, %v862
    %864 = vmatprep.mubr.f32.mxu0 0.0
    %865 = vmatmul.mubr.f32.gmra.mxu0 %v771
    %v866 = vpop.f32.mrf.mxu0
    %v867 = vadd.f32 0.0, %v866
    %v868 = vpop.f32.mrf.mxu0
    %v869 = vadd.f32 0.0, %v868
    %870 = vmatprep.mubr.f32.mxu0 0.0
    %871 = vmatmul.mubr.f32.gmra.mxu0 %v774
    %v872 = vpop.f32.mrf.mxu0
    %v873 = vadd.f32 0.0, %v872
    %v874 = vpop.f32.mrf.mxu0
    %v875 = vadd.f32 0.0, %v874
    %876 = vmatprep.mubr.f32.mxu0 0.0
    %877 = vmatmul.mubr.f32.gmra.mxu0 %v777
    %v878 = vpop.f32.mrf.mxu0
    %v879 = vadd.f32 0.0, %v878
    %v880 = vpop.f32.mrf.mxu0
    %v881 = vadd.f32 0.0, %v880
    %882 = vmatprep.mubr.f32.mxu0 0.0
    %883 = vmatmul.mubr.f32.gmra.mxu0 %v780
    %v884 = vpop.f32.mrf.mxu0
    %v885 = vadd.f32 0.0, %v884
    %v886 = vpop.f32.mrf.mxu0
    %v887 = vadd.f32 0.0, %v886
    %888 = vmatprep.mubr.f32.mxu0 0.0
    %889 = vmatmul.mubr.f32.gmra.mxu0 %v783
    %v890 = vpop.f32.mrf.mxu0
    %v891 = vadd.f32 0.0, %v890
    %v892 = vpop.f32.mrf.mxu0
    %v893 = vadd.f32 0.0, %v892
    %894 = vmatprep.mubr.f32.mxu0 0.0
    %895 = vmatmul.mubr.f32.gmra.mxu0 %v786
    %v896 = vpop.f32.mrf.mxu0
    %v897 = vadd.f32 0.0, %v896
    %v898 = vpop.f32.mrf.mxu0
    %v899 = vadd.f32 0.0, %v898
    %900 = vmatprep.mubr.f32.mxu0 0.0
    %901 = vmatmul.mubr.f32.gmra.mxu0 %v789
    %v902 = vpop.f32.mrf.mxu0
    %v903 = vadd.f32 0.0, %v902
    %v904 = vpop.f32.mrf.mxu0
    %v905 = vadd.f32 0.0, %v904
    %906 = vmatprep.mubr.f32.mxu0 0.0
    %907 = vmatmul.mubr.f32.gmra.mxu0 %v792
    %v908 = vpop.f32.mrf.mxu0
    %v909 = vadd.f32 0.0, %v908
    %v910 = vpop.f32.mrf.mxu0
    %v911 = vadd.f32 0.0, %v910
    %912 = vdwg.mxu0
    %913 = vmatprep.subr.mxu0 0.0
    %914 = vmatpush1.msra.mxu0 0.0
    %915 = vmatprep.subr.mxu0 0.0
    %916 = vmatpush1.msra.mxu0 0.0
    %917 = vmatprep.subr.mxu0 0.0
    %918 = vmatpush1.msra.mxu0 0.0
    %919 = vmatprep.subr.mxu0 0.0
    %920 = vmatpush1.msra.mxu0 0.0
    %921 = vmatprep.subr.mxu0 0.0
    %922 = vmatpush1.msra.mxu0 0.0
    %923 = vmatprep.subr.mxu0 0.0
    %924 = vmatpush1.msra.mxu0 0.0
    %925 = vmatprep.subr.mxu0 0.0
    %926 = vmatpush1.msra.mxu0 0.0
    %927 = vmatprep.subr.mxu0 0.0
    %928 = vmatpush1.msra.mxu0 0.0
    %929 = vmatprep.subr.mxu0 %v756
    %930 = vmatpush1.msra.mxu0 %v755
    %931 = vmatprep.subr.mxu0 %v752
    %932 = vmatpush1.msra.mxu0 %v751
    %933 = vmatprep.subr.mxu0 %v748
    %934 = vmatpush1.msra.mxu0 %v747
    %935 = vmatprep.subr.mxu0 %v744
    %936 = vmatpush1.msra.mxu0 %v743
    %937 = vmatprep.subr.mxu0 %v740
    %938 = vmatpush1.msra.mxu0 %v739
    %939 = vmatprep.subr.mxu0 %v736
    %940 = vmatpush1.msra.mxu0 %v735
    %941 = vmatprep.subr.mxu0 %v732
    %942 = vmatpush1.msra.mxu0 %v731
    %943 = vmatprep.subr.mxu0 %v728
    %944 = vmatpush1.msra.mxu0 %v727
    %945 = vmatprep.subr.mxu0 0.0
    %946 = vmatpush2.msra.mxu0 0.0
    %947 = vmatprep.subr.mxu0 0.0
    %948 = vmatpush2.msra.mxu0 0.0
    %949 = vmatprep.subr.mxu0 0.0
    %950 = vmatpush2.msra.mxu0 0.0
    %951 = vmatprep.subr.mxu0 0.0
    %952 = vmatpush2.msra.mxu0 0.0
    %953 = vmatprep.subr.mxu0 0.0
    %954 = vmatpush2.msra.mxu0 0.0
    %955 = vmatprep.subr.mxu0 0.0
    %956 = vmatpush2.msra.mxu0 0.0
    %957 = vmatprep.subr.mxu0 0.0
    %958 = vmatpush2.msra.mxu0 0.0
    %959 = vmatprep.subr.mxu0 0.0
    %960 = vmatpush2.msra.mxu0 0.0
    %961 = vmatprep.subr.mxu0 0.0
    %962 = vmatpush2.msra.mxu0 0.0
    %963 = vmatprep.subr.mxu0 0.0
    %964 = vmatpush2.msra.mxu0 0.0
    %965 = vmatprep.subr.mxu0 0.0
    %966 = vmatpush2.msra.mxu0 0.0
    %967 = vmatprep.subr.mxu0 0.0
    %968 = vmatpush2.msra.mxu0 0.0
    %969 = vmatprep.subr.mxu0 0.0
    %970 = vmatpush2.msra.mxu0 0.0
    %971 = vmatprep.subr.mxu0 0.0
    %972 = vmatpush2.msra.mxu0 0.0
    %973 = vmatprep.subr.mxu0 0.0
    %974 = vmatpush2.msra.mxu0 0.0
    %975 = vmatprep.subr.mxu0 0.0
    %976 = vmatpush2.msra.mxu0 0.0
    %977 = vmatprep.mubr.f32.mxu0 0.0
    %978 = vmatmul.mubr.f32.gmra.mxu0 %v768
    %v979 = vpop.f32.mrf.mxu0
    %v980 = vadd.f32 0.0, %v979
    %v981 = vpop.f32.mrf.mxu0
    %v982 = vadd.f32 0.0, %v981
    %983 = vmatprep.mubr.f32.mxu0 0.0
    %984 = vmatmul.mubr.f32.gmra.mxu0 %v771
    %v985 = vpop.f32.mrf.mxu0
    %v986 = vadd.f32 0.0, %v985
    %v987 = vpop.f32.mrf.mxu0
    %v988 = vadd.f32 0.0, %v987
    %989 = vmatprep.mubr.f32.mxu0 0.0
    %990 = vmatmul.mubr.f32.gmra.mxu0 %v774
    %v991 = vpop.f32.mrf.mxu0
    %v992 = vadd.f32 0.0, %v991
    %v993 = vpop.f32.mrf.mxu0
    %v994 = vadd.f32 0.0, %v993
    %995 = vmatprep.mubr.f32.mxu0 0.0
    %996 = vmatmul.mubr.f32.gmra.mxu0 %v777
    %v997 = vpop.f32.mrf.mxu0
    %v998 = vadd.f32 0.0, %v997
    %v999 = vpop.f32.mrf.mxu0
    %v1000 = vadd.f32 0.0, %v999
    %1001 = vmatprep.mubr.f32.mxu0 0.0
    %1002 = vmatmul.mubr.f32.gmra.mxu0 %v780
    %v1003 = vpop.f32.mrf.mxu0
    %v1004 = vadd.f32 0.0, %v1003
    %v1005 = vpop.f32.mrf.mxu0
    %v1006 = vadd.f32 0.0, %v1005
    %1007 = vmatprep.mubr.f32.mxu0 0.0
    %1008 = vmatmul.mubr.f32.gmra.mxu0 %v783
    %v1009 = vpop.f32.mrf.mxu0
    %v1010 = vadd.f32 0.0, %v1009
    %v1011 = vpop.f32.mrf.mxu0
    %v1012 = vadd.f32 0.0, %v1011
    %1013 = vmatprep.mubr.f32.mxu0 0.0
    %1014 = vmatmul.mubr.f32.gmra.mxu0 %v786
    %v1015 = vpop.f32.mrf.mxu0
    %v1016 = vadd.f32 0.0, %v1015
    %v1017 = vpop.f32.mrf.mxu0
    %v1018 = vadd.f32 0.0, %v1017
    %1019 = vmatprep.mubr.f32.mxu0 0.0
    %1020 = vmatmul.mubr.f32.gmra.mxu0 %v789
    %v1021 = vpop.f32.mrf.mxu0
    %v1022 = vadd.f32 0.0, %v1021
    %v1023 = vpop.f32.mrf.mxu0
    %v1024 = vadd.f32 0.0, %v1023
    %1025 = vmatprep.mubr.f32.mxu0 0.0
    %1026 = vmatmul.mubr.f32.gmra.mxu0 %v792
    %v1027 = vpop.f32.mrf.mxu0
    %v1028 = vadd.f32 0.0, %v1027
    %v1029 = vpop.f32.mrf.mxu0
    %v1030 = vadd.f32 0.0, %v1029
    %1031 = vdwg.mxu0
    %1032 = vrot.lane.b32.xlu0 %v861, 17
    %v1033 = vpop.permute.xlu0 %1032
    %1034 = vrot.lane.b32.xlu0 %v863, 17
    %v1035 = vpop.permute.xlu0 %1034
    %1036 = vrot.lane.b32.xlu0 %v980, 17
    %v1037 = vpop.permute.xlu0 %1036
    %1038 = vrot.lane.b32.xlu0 %v982, 17
    %v1039 = vpop.permute.xlu0 %1038
    %v1040 = vsel %vm78, %v1037, %v1039
    %v1041 = vsel %vm78, %v1035, %v1037
    %v1042 = vsel %vm78, %v1033, %v1035
    %v1043 = vsel %vm78, %v1039, %v1033
    %v1044 = vmul.f32 %v1043, %v86
    %v1045 = vmul.f32 %v1042, %v90
    %v1046 = vmul.f32 %v1041, %v94
    %v1047 = vmul.f32 %v1040, %v98
    %v1048 = vadd.f32 %v1044, 0.0
    %v1049 = vadd.f32 %v1045, 0.0
    %v1050 = vadd.f32 %v1046, 0.0
    %v1051 = vadd.f32 %v1047, 0.0
    %1052 = vrot.lane.b32.xlu0 %v867, 16
    %v1053 = vpop.permute.xlu0 %1052
    %1054 = vrot.lane.b32.xlu0 %v869, 16
    %v1055 = vpop.permute.xlu0 %1054
    %1056 = vrot.lane.b32.xlu0 %v986, 16
    %v1057 = vpop.permute.xlu0 %1056
    %1058 = vrot.lane.b32.xlu0 %v988, 16
    %v1059 = vpop.permute.xlu0 %1058
    %v1060 = vsel %vm111, %v1057, %v1059
    %v1061 = vsel %vm111, %v1055, %v1057
    %v1062 = vsel %vm111, %v1053, %v1055
    %v1063 = vsel %vm111, %v1059, %v1053
    %v1064 = vmul.f32 %v1063, %v119
    %v1065 = vmul.f32 %v1062, %v123
    %v1066 = vmul.f32 %v1061, %v127
    %v1067 = vmul.f32 %v1060, %v131
    %v1068 = vadd.f32 %v1048, %v1064
    %v1069 = vadd.f32 %v1049, %v1065
    %v1070 = vadd.f32 %v1050, %v1066
    %v1071 = vadd.f32 %v1051, %v1067
    %1072 = vrot.lane.b32.xlu0 %v873, 15
    %v1073 = vpop.permute.xlu0 %1072
    %1074 = vrot.lane.b32.xlu0 %v875, 15
    %v1075 = vpop.permute.xlu0 %1074
    %1076 = vrot.lane.b32.xlu0 %v992, 15
    %v1077 = vpop.permute.xlu0 %1076
    %1078 = vrot.lane.b32.xlu0 %v994, 15
    %v1079 = vpop.permute.xlu0 %1078
    %v1080 = vsel %vm144, %v1077, %v1079
    %v1081 = vsel %vm144, %v1075, %v1077
    %v1082 = vsel %vm144, %v1073, %v1075
    %v1083 = vsel %vm144, %v1079, %v1073
    %v1084 = vmul.f32 %v1083, %v152
    %v1085 = vmul.f32 %v1082, %v156
    %v1086 = vmul.f32 %v1081, %v160
    %v1087 = vmul.f32 %v1080, %v164
    %v1088 = vadd.f32 %v1068, %v1084
    %v1089 = vadd.f32 %v1069, %v1085
    %v1090 = vadd.f32 %v1070, %v1086
    %v1091 = vadd.f32 %v1071, %v1087
    %1092 = vrot.lane.b32.xlu0 %v879, 1
    %v1093 = vpop.permute.xlu0 %1092
    %1094 = vrot.lane.b32.xlu0 %v881, 1
    %v1095 = vpop.permute.xlu0 %1094
    %1096 = vrot.lane.b32.xlu0 %v998, 1
    %v1097 = vpop.permute.xlu0 %1096
    %1098 = vrot.lane.b32.xlu0 %v1000, 1
    %v1099 = vpop.permute.xlu0 %1098
    %v1100 = vsel %vm177, %v1097, %v1099
    %v1101 = vsel %vm177, %v1095, %v1097
    %v1102 = vsel %vm177, %v1093, %v1095
    %v1103 = vsel %vm177, %v1099, %v1093
    %v1104 = vmul.f32 %v1103, %v185
    %v1105 = vmul.f32 %v1102, %v189
    %v1106 = vmul.f32 %v1101, %v193
    %v1107 = vmul.f32 %v1100, %v197
    %v1108 = vadd.f32 %v1088, %v1104
    %v1109 = vadd.f32 %v1089, %v1105
    %v1110 = vadd.f32 %v1090, %v1106
    %v1111 = vadd.f32 %v1091, %v1107
    %v1112 = vmul.f32 %v885, %v205
    %v1113 = vmul.f32 %v887, %v209
    %v1114 = vmul.f32 %v1004, %v213
    %v1115 = vmul.f32 %v1006, %v217
    %v1116 = vadd.f32 %v1108, %v1112
    %v1117 = vadd.f32 %v1109, %v1113
    %v1118 = vadd.f32 %v1110, %v1114
    %v1119 = vadd.f32 %v1111, %v1115
    %1120 = vrot.lane.b32.xlu0 %v891, 127
    %v1121 = vpop.permute.xlu0 %1120
    %1122 = vrot.lane.b32.xlu0 %v893, 127
    %v1123 = vpop.permute.xlu0 %1122
    %1124 = vrot.lane.b32.xlu0 %v1010, 127
    %v1125 = vpop.permute.xlu0 %1124
    %1126 = vrot.lane.b32.xlu0 %v1012, 127
    %v1127 = vpop.permute.xlu0 %1126
    %v1128 = vsel %vm230, %v1125, %v1127
    %v1129 = vsel %vm230, %v1123, %v1125
    %v1130 = vsel %vm230, %v1121, %v1123
    %v1131 = vsel %vm230, %v1127, %v1121
    %v1132 = vmul.f32 %v1130, %v238
    %v1133 = vmul.f32 %v1129, %v242
    %v1134 = vmul.f32 %v1128, %v246
    %v1135 = vmul.f32 %v1131, %v250
    %v1136 = vadd.f32 %v1116, %v1132
    %v1137 = vadd.f32 %v1117, %v1133
    %v1138 = vadd.f32 %v1118, %v1134
    %v1139 = vadd.f32 %v1119, %v1135
    %1140 = vrot.lane.b32.xlu0 %v897, 113
    %v1141 = vpop.permute.xlu0 %1140
    %1142 = vrot.lane.b32.xlu0 %v899, 113
    %v1143 = vpop.permute.xlu0 %1142
    %1144 = vrot.lane.b32.xlu0 %v1016, 113
    %v1145 = vpop.permute.xlu0 %1144
    %1146 = vrot.lane.b32.xlu0 %v1018, 113
    %v1147 = vpop.permute.xlu0 %1146
    %v1148 = vsel %vm263, %v1145, %v1147
    %v1149 = vsel %vm263, %v1143, %v1145
    %v1150 = vsel %vm263, %v1141, %v1143
    %v1151 = vsel %vm263, %v1147, %v1141
    %v1152 = vmul.f32 %v1150, %v271
    %v1153 = vmul.f32 %v1149, %v275
    %v1154 = vmul.f32 %v1148, %v279
    %v1155 = vmul.f32 %v1151, %v283
    %v1156 = vadd.f32 %v1136, %v1152
    %v1157 = vadd.f32 %v1137, %v1153
    %v1158 = vadd.f32 %v1138, %v1154
    %v1159 = vadd.f32 %v1139, %v1155
    %1160 = vrot.lane.b32.xlu0 %v903, 112
    %v1161 = vpop.permute.xlu0 %1160
    %1162 = vrot.lane.b32.xlu0 %v905, 112
    %v1163 = vpop.permute.xlu0 %1162
    %1164 = vrot.lane.b32.xlu0 %v1022, 112
    %v1165 = vpop.permute.xlu0 %1164
    %1166 = vrot.lane.b32.xlu0 %v1024, 112
    %v1167 = vpop.permute.xlu0 %1166
    %v1168 = vsel %vm296, %v1165, %v1167
    %v1169 = vsel %vm296, %v1163, %v1165
    %v1170 = vsel %vm296, %v1161, %v1163
    %v1171 = vsel %vm296, %v1167, %v1161
    %v1172 = vmul.f32 %v1170, %v304
    %v1173 = vmul.f32 %v1169, %v308
    %v1174 = vmul.f32 %v1168, %v312
    %v1175 = vmul.f32 %v1171, %v316
    %v1176 = vadd.f32 %v1156, %v1172
    %v1177 = vadd.f32 %v1157, %v1173
    %v1178 = vadd.f32 %v1158, %v1174
    %v1179 = vadd.f32 %v1159, %v1175
    %1180 = vrot.lane.b32.xlu0 %v909, 111
    %v1181 = vpop.permute.xlu0 %1180
    %1182 = vrot.lane.b32.xlu0 %v911, 111
    %v1183 = vpop.permute.xlu0 %1182
    %1184 = vrot.lane.b32.xlu0 %v1028, 111
    %v1185 = vpop.permute.xlu0 %1184
    %1186 = vrot.lane.b32.xlu0 %v1030, 111
    %v1187 = vpop.permute.xlu0 %1186
    %v1188 = vsel %vm329, %v1185, %v1187
    %v1189 = vsel %vm329, %v1183, %v1185
    %v1190 = vsel %vm329, %v1181, %v1183
    %v1191 = vsel %vm329, %v1187, %v1181
    %v1192 = vmul.f32 %v1190, %v337
    %v1193 = vmul.f32 %v1189, %v341
    %v1194 = vmul.f32 %v1188, %v345
    %v1195 = vmul.f32 %v1191, %v349
    %v1196 = vadd.f32 %v1176, %v1192
    %v1197 = vadd.f32 %v1177, %v1193
    %v1198 = vadd.f32 %v1178, %v1194
    %v1199 = vadd.f32 %v1179, %v1195
    %v1200 = vtanh.pop %v1196
    %v1201 = vtanh.pop %v1197
    %v1202 = vtanh.pop %v1198
    %v1203 = vtanh.pop %v1199
    %v1204 = vsub.f32 1.0, %v30
    %v1205 = vmul.f32 %v1200, 1.442695
    %v1206 = vpow.pop %v1205
    %v1207 = vmul.f32 %v1201, 1.442695
    %v1208 = vpow.pop %v1207
    %v1209 = vmul.f32 %v1202, 1.442695
    %v1210 = vpow.pop %v1209
    %v1211 = vmul.f32 %v1203, 1.442695
    %v1212 = vpow.pop %v1211
    %v1213 = vmul.f32 %v31, %v1206
    %v1214 = vmul.f32 %v32, %v1208
    %v1215 = vmul.f32 %v33, %v1210
    %v1216 = vmul.f32 %v34, %v1212
    %v1221 = vrot.slane %v1196, 4
    %v1222 = vrot.slane %v1197, 4
    %v1223 = vrot.slane %v1198, 4
    %v1224 = vrot.slane %v1199, 4
    %v1229 = vadd.f32 %v1213, %v1221
    %v1230 = vadd.f32 %v1214, %v1222
    %v1231 = vadd.f32 %v1215, %v1223
    %v1232 = vadd.f32 %v1216, %v1224
    %v1234 = vlaneseq
    %v1235 = vshrl.u32 %v1234, 7
    %v1236 = vsub.s32 0, %v1235
    %v1237 = vrot.slane %v1204, %v1236
    %v1238 = vlaneseq
    %v1239 = vshrl.u32 %v1238, 7
    %v1240 = vsub.s32 1, %v1239
    %v1241 = vrot.slane %v1204, %v1240
    %v1242 = vlaneseq
    %v1243 = vshrl.u32 %v1242, 7
    %v1244 = vsub.s32 2, %v1243
    %v1245 = vrot.slane %v1204, %v1244
    %v1246 = vlaneseq
    %v1247 = vshrl.u32 %v1246, 7
    %v1248 = vsub.s32 3, %v1247
    %v1249 = vrot.slane %v1204, %v1248
    %v1254 = vmul.f32 %v1237, %v1229
    %v1255 = vmul.f32 %v1241, %v1230
    %v1256 = vmul.f32 %v1245, %v1231
    %v1257 = vmul.f32 %v1249, %v1232
    %v1258 = vadd.f32 %v56, %v1254
    %v1259 = vadd.f32 %v57, %v1255
    %v1260 = vadd.f32 %v58, %v1256
    %v1261 = vadd.f32 %v59, %v1257
    %v1266 = vcombine.low %v1258, %v1259
    %v1267 = vcombine.low %v1260, %v1261
    %1270 = vst [vmem:[#allocation2] sm:$0xff] %v1266
    %1271 = vst [vmem:[#allocation2 + $0x8] sm:$0xff] %v1267
    %v1272 = vmul.f32 %v1200, %v1237
    %v1273 = vmul.f32 %v1201, %v1241
    %v1274 = vmul.f32 %v1202, %v1245
    %v1275 = vmul.f32 %v1203, %v1249
    %vm1276 = vcmask 1043456
    %v1277 = vsel %vm1276, %v1272, 0.0
    %v1278 = vrot.slane %v1277, 4
    %v1279 = vadd.f32 %v1277, %v1278
    %v1280 = vrot.slane %v1279, 2
    %v1281 = vadd.f32 %v1279, %v1280
    %v1282 = vrot.slane %v1281, 1
    %v1283 = vadd.f32 %v1281, %v1282
    %v1284 = vsel %vm1276, %v1273, 0.0
    %v1285 = vrot.slane %v1284, 4
    %v1286 = vadd.f32 %v1284, %v1285
    %v1287 = vrot.slane %v1286, 2
    %v1288 = vadd.f32 %v1286, %v1287
    %v1289 = vrot.slane %v1288, 1
    %v1290 = vadd.f32 %v1288, %v1289
    %v1291 = vsel %vm1276, %v1274, 0.0
    %v1292 = vrot.slane %v1291, 4
    %v1293 = vadd.f32 %v1291, %v1292
    %v1294 = vrot.slane %v1293, 2
    %v1295 = vadd.f32 %v1293, %v1294
    %v1296 = vrot.slane %v1295, 1
    %v1297 = vadd.f32 %v1295, %v1296
    %v1298 = vsel %vm1276, %v1275, 0.0
    %v1299 = vrot.slane %v1298, 4
    %v1300 = vadd.f32 %v1298, %v1299
    %v1301 = vrot.slane %v1300, 2
    %v1302 = vadd.f32 %v1300, %v1301
    %v1303 = vrot.slane %v1302, 1
    %v1304 = vadd.f32 %v1302, %v1303
    %v1305 = vld [vmem:[%s6] sm:$0xff]
    %v1306 = vld [vmem:[%s6 + $0x8] sm:$0xff]
    %v1307 = vld [vmem:[%s6 + $0x10] sm:$0xff]
    %v1308 = vld [vmem:[%s6 + $0x18] sm:$0xff]
    %v1309 = vld [vmem:[%s6 + $0x20] sm:$0xff]
    %v1310 = vld [vmem:[%s6 + $0x28] sm:$0xff]
    %v1311 = vld [vmem:[%s6 + $0x30] sm:$0xff]
    %v1312 = vld [vmem:[%s6 + $0x38] sm:$0xff]
    %v1313 = vld [vmem:[%s6 + $0x40] sm:$0xff]
    %v1314 = vld [vmem:[%s6 + $0x48] sm:$0xff]
    %v1315 = vld [vmem:[%s6 + $0x50] sm:$0xff]
    %v1316 = vld [vmem:[%s6 + $0x58] sm:$0xff]
    %v1317 = vld [vmem:[%s6 + $0x60] sm:$0xff]
    %v1318 = vld [vmem:[%s6 + $0x68] sm:$0xff]
    %v1319 = vld [vmem:[%s6 + $0x70] sm:$0xff]
    %v1320 = vld [vmem:[%s6 + $0x78] sm:$0xff]
    %v1321 = vld [vmem:[%s6 + $0x80] sm:$0xff]
    %v1322 = vld [vmem:[%s6 + $0x88] sm:$0xff]
    %v1323 = vld [vmem:[%s6 + $0x90] sm:$0xff]
    %v1324 = vld [vmem:[%s6 + $0x98] sm:$0xff]
    %v1325 = vld [vmem:[%s6 + $0xa0] sm:$0xff]
    %v1326 = vld [vmem:[%s6 + $0xa8] sm:$0xff]
    %v1327 = vld [vmem:[%s6 + $0xb0] sm:$0xff]
    %v1328 = vld [vmem:[%s6 + $0xb8] sm:$0xff]
    %v1329 = vld [vmem:[%s6 + $0xc0] sm:$0xff]
    %v1330 = vld [vmem:[%s6 + $0xc8] sm:$0xff]
    %v1331 = vld [vmem:[%s6 + $0xd0] sm:$0xff]
    %v1332 = vld [vmem:[%s6 + $0xd8] sm:$0xff]
    %v1333 = vld [vmem:[%s6 + $0xe0] sm:$0xff]
    %v1334 = vld [vmem:[%s6 + $0xe8] sm:$0xff]
    %v1335 = vld [vmem:[%s6 + $0xf0] sm:$0xff]
    %v1336 = vld [vmem:[%s6 + $0xf8] sm:$0xff]
    %1337 = vmatprep.subr.mxu0 0.0
    %1338 = vmatpush1.msra.mxu0 %v1320
    %1339 = vmatprep.subr.mxu0 0.0
    %1340 = vmatpush1.msra.mxu0 %v1319
    %1341 = vmatprep.subr.mxu0 0.0
    %1342 = vmatpush1.msra.mxu0 %v1318
    %1343 = vmatprep.subr.mxu0 0.0
    %1344 = vmatpush1.msra.mxu0 %v1317
    %1345 = vmatprep.subr.mxu0 0.0
    %1346 = vmatpush1.msra.mxu0 %v1316
    %1347 = vmatprep.subr.mxu0 0.0
    %1348 = vmatpush1.msra.mxu0 %v1315
    %1349 = vmatprep.subr.mxu0 0.0
    %1350 = vmatpush1.msra.mxu0 %v1314
    %1351 = vmatprep.subr.mxu0 0.0
    %1352 = vmatpush1.msra.mxu0 %v1313
    %1353 = vmatprep.subr.mxu0 0.0
    %1354 = vmatpush1.msra.mxu0 %v1312
    %1355 = vmatprep.subr.mxu0 0.0
    %1356 = vmatpush1.msra.mxu0 %v1311
    %1357 = vmatprep.subr.mxu0 0.0
    %1358 = vmatpush1.msra.mxu0 %v1310
    %1359 = vmatprep.subr.mxu0 0.0
    %1360 = vmatpush1.msra.mxu0 %v1309
    %1361 = vmatprep.subr.mxu0 0.0
    %1362 = vmatpush1.msra.mxu0 %v1308
    %1363 = vmatprep.subr.mxu0 0.0
    %1364 = vmatpush1.msra.mxu0 %v1307
    %1365 = vmatprep.subr.mxu0 0.0
    %1366 = vmatpush1.msra.mxu0 %v1306
    %1367 = vmatprep.subr.mxu0 0.0
    %1368 = vmatpush1.msra.mxu0 %v1305
    %1369 = vmatprep.subr.mxu0 0.0
    %1370 = vmatpush2.msra.mxu0 %v1336
    %1371 = vmatprep.subr.mxu0 0.0
    %1372 = vmatpush2.msra.mxu0 %v1335
    %1373 = vmatprep.subr.mxu0 0.0
    %1374 = vmatpush2.msra.mxu0 %v1334
    %1375 = vmatprep.subr.mxu0 0.0
    %1376 = vmatpush2.msra.mxu0 %v1333
    %1377 = vmatprep.subr.mxu0 0.0
    %1378 = vmatpush2.msra.mxu0 %v1332
    %1379 = vmatprep.subr.mxu0 0.0
    %1380 = vmatpush2.msra.mxu0 %v1331
    %1381 = vmatprep.subr.mxu0 0.0
    %1382 = vmatpush2.msra.mxu0 %v1330
    %1383 = vmatprep.subr.mxu0 0.0
    %1384 = vmatpush2.msra.mxu0 %v1329
    %1385 = vmatprep.subr.mxu0 0.0
    %1386 = vmatpush2.msra.mxu0 %v1328
    %1387 = vmatprep.subr.mxu0 0.0
    %1388 = vmatpush2.msra.mxu0 %v1327
    %1389 = vmatprep.subr.mxu0 0.0
    %1390 = vmatpush2.msra.mxu0 %v1326
    %1391 = vmatprep.subr.mxu0 0.0
    %1392 = vmatpush2.msra.mxu0 %v1325
    %1393 = vmatprep.subr.mxu0 0.0
    %1394 = vmatpush2.msra.mxu0 %v1324
    %1395 = vmatprep.subr.mxu0 0.0
    %1396 = vmatpush2.msra.mxu0 %v1323
    %1397 = vmatprep.subr.mxu0 0.0
    %1398 = vmatpush2.msra.mxu0 %v1322
    %1399 = vmatprep.subr.mxu0 0.0
    %1400 = vmatpush2.msra.mxu0 %v1321
    %1401 = vmatprep.mubr.f32.mxu0 %v1290
    %1402 = vmatmul.mubr.f32.gmra.mxu0 %v1283
    %v1403 = vpop.f32.mrf.mxu0
    %v1404 = vadd.f32 0.0, %v1403
    %v1405 = vpop.f32.mrf.mxu0
    %1406 = vdwg.mxu0
    %1407 = vmatprep.subr.mxu0 0.0
    %1408 = vmatpush1.msra.mxu0 %v1320
    %1409 = vmatprep.subr.mxu0 0.0
    %1410 = vmatpush1.msra.mxu0 %v1319
    %1411 = vmatprep.subr.mxu0 0.0
    %1412 = vmatpush1.msra.mxu0 %v1318
    %1413 = vmatprep.subr.mxu0 0.0
    %1414 = vmatpush1.msra.mxu0 %v1317
    %1415 = vmatprep.subr.mxu0 0.0
    %1416 = vmatpush1.msra.mxu0 %v1316
    %1417 = vmatprep.subr.mxu0 0.0
    %1418 = vmatpush1.msra.mxu0 %v1315
    %1419 = vmatprep.subr.mxu0 0.0
    %1420 = vmatpush1.msra.mxu0 %v1314
    %1421 = vmatprep.subr.mxu0 0.0
    %1422 = vmatpush1.msra.mxu0 %v1313
    %1423 = vmatprep.subr.mxu0 0.0
    %1424 = vmatpush1.msra.mxu0 %v1312
    %1425 = vmatprep.subr.mxu0 0.0
    %1426 = vmatpush1.msra.mxu0 %v1311
    %1427 = vmatprep.subr.mxu0 0.0
    %1428 = vmatpush1.msra.mxu0 %v1310
    %1429 = vmatprep.subr.mxu0 0.0
    %1430 = vmatpush1.msra.mxu0 %v1309
    %1431 = vmatprep.subr.mxu0 0.0
    %1432 = vmatpush1.msra.mxu0 %v1308
    %1433 = vmatprep.subr.mxu0 0.0
    %1434 = vmatpush1.msra.mxu0 %v1307
    %1435 = vmatprep.subr.mxu0 0.0
    %1436 = vmatpush1.msra.mxu0 %v1306
    %1437 = vmatprep.subr.mxu0 0.0
    %1438 = vmatpush1.msra.mxu0 %v1305
    %1439 = vmatprep.subr.mxu0 0.0
    %1440 = vmatpush2.msra.mxu0 %v1336
    %1441 = vmatprep.subr.mxu0 0.0
    %1442 = vmatpush2.msra.mxu0 %v1335
    %1443 = vmatprep.subr.mxu0 0.0
    %1444 = vmatpush2.msra.mxu0 %v1334
    %1445 = vmatprep.subr.mxu0 0.0
    %1446 = vmatpush2.msra.mxu0 %v1333
    %1447 = vmatprep.subr.mxu0 0.0
    %1448 = vmatpush2.msra.mxu0 %v1332
    %1449 = vmatprep.subr.mxu0 0.0
    %1450 = vmatpush2.msra.mxu0 %v1331
    %1451 = vmatprep.subr.mxu0 0.0
    %1452 = vmatpush2.msra.mxu0 %v1330
    %1453 = vmatprep.subr.mxu0 0.0
    %1454 = vmatpush2.msra.mxu0 %v1329
    %1455 = vmatprep.subr.mxu0 0.0
    %1456 = vmatpush2.msra.mxu0 %v1328
    %1457 = vmatprep.subr.mxu0 0.0
    %1458 = vmatpush2.msra.mxu0 %v1327
    %1459 = vmatprep.subr.mxu0 0.0
    %1460 = vmatpush2.msra.mxu0 %v1326
    %1461 = vmatprep.subr.mxu0 0.0
    %1462 = vmatpush2.msra.mxu0 %v1325
    %1463 = vmatprep.subr.mxu0 0.0
    %1464 = vmatpush2.msra.mxu0 %v1324
    %1465 = vmatprep.subr.mxu0 0.0
    %1466 = vmatpush2.msra.mxu0 %v1323
    %1467 = vmatprep.subr.mxu0 0.0
    %1468 = vmatpush2.msra.mxu0 %v1322
    %1469 = vmatprep.subr.mxu0 0.0
    %1470 = vmatpush2.msra.mxu0 %v1321
    %1471 = vmatprep.mubr.f32.mxu0 %v1304
    %1472 = vmatmul.mubr.f32.gmra.mxu0 %v1297
    %v1473 = vpop.f32.mrf.mxu0
    %v1474 = vadd.f32 0.0, %v1473
    %v1475 = vpop.f32.mrf.mxu0
    %1476 = vdwg.mxu0
    %v1478 = vrot.slane %v1474, 7
    %vm1480 = vcmask 1040384
    %v1481 = vsel %vm1480, %v1404, %v1478
    %vm1482 = vcmask 123904
    %1483 = vst.msk [vmem:[#allocation4] sm:$0x3] %vm1482, %v1481
    // Predicated region
    $region30: #{tpu_custom_call.1} parent=1 // pred_check
      _
    $region31: #{tpu_custom_call.1} parent=1 // pred_check_branch
      %1485 = sbr.rel (0) target = $region33
    $region32: #{tpu_custom_call.1} parent=1 // pred_region
      %s1487 = ssub.s32 256, 256
      %1488 = vsyncadd [#allocation3], %s1487
      %s1490 = sshll.u32 [#allocation2], 4
      %s1491 = int_to_ptr.vmem [resolvable:$true] %s1490
      %1493 = dma.vmem_to_hbm [thread:$0]  %s1491, 256, %s7, [#allocation3]
    $region33: #{tpu_custom_call.1} parent=1 // pred_fallthru
      _
    // Predicated region
    $region34: #{tpu_custom_call.1} parent=1 // pred_check
      _
    $region35: #{tpu_custom_call.1} parent=1 // pred_check_branch
      %1495 = sbr.rel (0) target = $region37
    $region36: #{tpu_custom_call.1} parent=1 // pred_region
      %s1497 = ssub.s32 32, 32
      %1498 = vsyncadd [#allocation5], %s1497
      %s1500 = sshll.u32 [#allocation4], 4
      %s1501 = int_to_ptr.vmem [resolvable:$true] %s1500
      %1503 = dma.vmem_to_hbm [thread:$0]  %s1501, 32, %s8, [#allocation5]
    $region37: #{tpu_custom_call.1} parent=1 // pred_fallthru
      _
    // Predicated region
    $region38: #{tpu_custom_call.1} parent=1 // pred_check
      _
    $region39: #{tpu_custom_call.1} parent=1 // pred_check_branch
      %1505 = sbr.rel (0) target = $region41
    $region40: #{tpu_custom_call.1} parent=1 // pred_region
      %1506 = dma.done [#allocation3], 256
    $region41: #{tpu_custom_call.1} parent=1 // pred_fallthru
      _
    // Predicated region
    $region42: #{tpu_custom_call.1} parent=1 // pred_check
      _
    $region43: #{tpu_custom_call.1} parent=1 // pred_check_branch
      %1508 = sbr.rel (0) target = $region45
    $region44: #{tpu_custom_call.1} parent=1 // pred_region
      %1509 = dma.done [#allocation5], 32
    $region45: #{tpu_custom_call.1} parent=1 // pred_fallthru
      _
    %1510 = vsyncpa [#allocation3], 1
    %1511 = vsyncpa [#allocation5], 1

</llo_original>
